<compile_context>
chip_gen: v7x
topology: tpu7x:2x2x1
jax: 0.10.0
libtpu: 0.0.40
codegen_flags: <defaults>
</compile_context>

<pallas_src>
import jax
import jax.numpy as jnp
from jax.experimental import pallas as pl
from jax.experimental.pallas import tpu as pltpu

LANE = 128          # TPU lane width; every channel dim is zero-padded to this
EPS = 1e-5          # BatchNorm eps (PyTorch default)
NEG_BIG = -1e30     # bias for padded softmax classes -> excluded from the LSE


# ----------------------------- in-kernel helpers -----------------------------

def _bn_small(x, gamma, beta):
    """BatchNorm1d (train mode, biased variance) for a small (batch, C) f32
    block (norm_a / norm_b); centered form, tiny XLU reductions are fine."""
    inv = 1.0 / float(x.shape[0])
    mean = jnp.sum(x, axis=0, keepdims=True) * inv
    d = x - mean
    var = jnp.sum(d * d, axis=0, keepdims=True) * inv
    return d * jax.lax.rsqrt(var + EPS) * gamma + beta


def _bn_frames(a, mask_row, cnt, gamma, beta):
    """Masked BatchNorm1d (train mode, biased variance) over the rows of an
    (R, C) bf16 activation slab.

    Stats are accumulated in f32 on the MXU via a lane-dense (1, R) 0/1 mask
    row: sum = mask @ a, sumsq = mask @ (a*a).  Uncentered E[x^2]-mean^2 form
    is clamped at 0 to guard against cancellation (accumulation stays f32)."""
    inv = 1.0 / float(cnt)
    s1 = jnp.dot(mask_row, a, preferred_element_type=jnp.float32)       # (1,C)
    s2 = jnp.dot(mask_row, a * a, preferred_element_type=jnp.float32)   # (1,C)
    mean = s1 * inv
    var = jnp.maximum(s2 * inv - mean * mean, 0.0)
    scale = jax.lax.rsqrt(var + EPS) * gamma
    shift = beta - mean * scale
    return (a * scale + shift).astype(jnp.bfloat16)


# --------------------------------- kernel ------------------------------------

def make_xvector_kernel(plan, batch, t_pad, t_valid):
    total_rows = batch * t_pad
    n_layers = len(plan)

    # Static per-layer validity windows (frames whose TDNN receptive field
    # stays inside the utterance) -- reproduce PyTorch's valid splice.
    windows = []
    v0, v1 = 0, t_valid
    for (ctx, _, _, _) in plan:
        v0, v1 = v0 - min(ctx), v1 - max(ctx)
        windows.append((v0, v1))
    n_frames = windows[-1][1] - windows[-1][0]
    final_cnt = batch * n_frames

    def kernel(x_ref, onehot_ref, aux_ref, w_ref, v_ref, out_ref):
        wi = 0      # next (128, 128) weight block
        vi = 0      # next (1, 128) bias / gamma / beta row

        def vec(i):
            return v_ref[pl.ds(i, 1), :]                 # (1, LANE) f32

        def mask(l):
            return aux_ref[pl.ds(l, 1), :]               # (1, rows) bf16 0/1

        # ---- frame-level TDNN + SequenceWise(BatchNorm1d) stack -------------
        # One lane-dense (batch*t_pad, 128) bf16 slab.  The splice at offset o
        # is applied to the matmul OUTPUT (roll/matmul commute).  Packed
        # layers: one matmul + lane/sublane rolls to reassemble the offsets.
        h = x_ref[...]                                   # (rows, LANE) bf16
        for l, (ctx, _in_dim, hdim, packed) in enumerate(plan):
            if packed:
                p_all = jnp.dot(h, w_ref[wi],
                                preferred_element_type=jnp.float32)
                wi += 1
                z = None
                for k, o in enumerate(ctx):
                    t = p_all
                    if o != 0:   # sublane roll: t[r] <- p_all[r + o]
                        t = pltpu.roll(t, shift=(-o) % total_rows, axis=0)
                    if k != 0:   # lane roll: offset-k block -> lanes [0, hdim)
                        t = pltpu.roll(t, shift=(-(k * hdim)) % LANE, axis=1)
                    z = t if z is None else z + t
            else:
                z = None
                for o in ctx:
                    p = jnp.dot(h, w_ref[wi],
                                preferred_element_type=jnp.float32)
                    wi += 1
                    if o != 0:
                        p = pltpu.roll(p, shift=(-o) % total_rows, axis=0)
                    z = p if z is None else z + p
            b, g, be = vec(vi), vec(vi + 1), vec(vi + 2)
            vi += 3
            a = jnp.maximum(z + b, 0.0).astype(jnp.bfloat16)
            cnt = batch * (windows[l][1] - windows[l][0])
            h = _bn_frames(a, mask(l), cnt, g, be)

        fmask = mask(n_layers - 1)

        # ---- SequenceWise(MLP): two (Linear -> ReLU -> BatchNorm1d) blocks --
        for _ in range(2):
            z = jnp.dot(h, w_ref[wi], preferred_element_type=jnp.float32)
            wi += 1
            b, g, be = vec(vi), vec(vi + 1), vec(vi + 2)
            vi += 3
            a = jnp.maximum(z + b, 0.0).astype(jnp.bfloat16)
            h = _bn_frames(a, fmask, final_cnt, g, be)

        # ---- StatsPooling: per-utterance mean / unbiased std over valid frames
        # One MXU matmul against the host-precomputed (batch, rows) 0/1 pooling
        # matrix replaces the per-utterance slice + reduce loop.
        pool = aux_ref[pl.ds(n_layers, batch), :]        # (batch, rows) bf16
        s1 = jnp.dot(pool, h, preferred_element_type=jnp.float32)
        s2 = jnp.dot(pool, h * h, preferred_element_type=jnp.float32)
        inv_n = 1.0 / float(n_frames)
        mean_t = s1 * inv_n                              # (batch, LANE)
        var_b = jnp.maximum(s2 * inv_n - mean_t * mean_t, 0.0)
        std_t = jnp.sqrt(var_b * (float(n_frames) / float(n_frames - 1)))

        # ---- embed_a -> ReLU -> norm_a ---------------------------------------
        # concat([mean, std]) @ Wa  ==  mean @ Wa_mean + std @ Wa_std
        ea = (jnp.dot(mean_t.astype(jnp.bfloat16), w_ref[wi],
                      preferred_element_type=jnp.float32) +
              jnp.dot(std_t.astype(jnp.bfloat16), w_ref[wi + 1],
                      preferred_element_type=jnp.float32))
        wi += 2
        b, g, be = vec(vi), vec(vi + 1), vec(vi + 2)
        vi += 3
        post_a = _bn_small(jnp.maximum(ea + b, 0.0), g, be)

        # ---- Dropout(p=0) == identity; embed_b -> ReLU -> norm_b -------------
        eb = jnp.dot(post_a.astype(jnp.bfloat16), w_ref[wi],
                     preferred_element_type=jnp.float32)
        wi += 1
        b, g, be = vec(vi), vec(vi + 1), vec(vi + 2)
        vi += 3
        xb = _bn_small(jnp.maximum(eb + b, 0.0), g, be)

        # ---- final Linear + CrossEntropyLoss (mean reduction) ----------------
        logits = jnp.dot(xb.astype(jnp.bfloat16), w_ref[wi],
                         preferred_element_type=jnp.float32) + vec(vi)
        m = jnp.max(logits, axis=-1, keepdims=True)
        lse = m + jnp.log(jnp.sum(jnp.exp(logits - m), axis=-1, keepdims=True))
        tgt = jnp.sum(onehot_ref[...] * logits, axis=-1, keepdims=True)
        per_example = lse - tgt                          # (batch, 1)
        # scalar loss exits through SMEM (no masked partial vector store)
        out_ref[0] = jnp.sum(per_example) * (1.0 / float(batch))

    return kernel


# ------------------------------ param packing --------------------------------

def build_plan(params, splice_indexes, input_size):
    """Static per-TDNN-layer plan: (context, in_dim, out_dim, packed?).
    A layer is 'packed' when all per-offset weight blocks fit side by side in
    the output lanes of a single 128x128 MXU tile."""
    plan = []
    in_dim = input_size
    pi = 0
    for ctx in splice_indexes:
        ctx = tuple(int(c) for c in ctx)
        w = params[pi]
        hdim = int(w.shape[1])
        assert w.shape[0] == in_dim * len(ctx)
        plan.append((ctx, in_dim, hdim, len(ctx) * hdim <= LANE))
        in_dim = hdim
        pi += 4
    return tuple(plan)


def pack_params(params, plan):
    """Pack real-shaped params into one bf16 weight blob (n_blocks,128,128)
    and one f32 vector blob (n_rows,128), in kernel consumption order."""

    def pad_mat(w):
        din, dout = w.shape
        assert din <= LANE and dout <= LANE
        return jnp.zeros((LANE, LANE), jnp.float32).at[:din, :dout].set(w)

    def pad_vec(v, fill=0.0):
        v = v.reshape(-1)
        assert v.shape[0] <= LANE
        return jnp.full((LANE,), fill, jnp.float32).at[:v.shape[0]].set(v)

    p = list(params)
    i = 0
    w_blocks, v_rows = [], []

    # TDNN + SequenceWise(BN) layers
    for (ctx, in_dim, hdim, packed) in plan:
        w, b, g, be = p[i], p[i + 1], p[i + 2], p[i + 3]
        i += 4
        assert w.shape == (in_dim * len(ctx), hdim)
        if packed:
            # pack offset block k into output lanes [k*hdim, (k+1)*hdim)
            blk = jnp.zeros((LANE, LANE), jnp.float32)
            for k in range(len(ctx)):
                blk = blk.at[:in_dim, k * hdim:(k + 1) * hdim].set(
                    w[k * in_dim:(k + 1) * in_dim, :])
            w_blocks.append(blk)
        else:
            for k in range(len(ctx)):            # block k <-> offset ctx[k]
                w_blocks.append(pad_mat(w[k * in_dim:(k + 1) * in_dim, :]))
        v_rows += [pad_vec(b), pad_vec(g, 1.0), pad_vec(be)]

    # MLP (pre_stat): two (Linear -> ReLU -> BN) blocks
    for _ in range(2):
        w, b, g, be = p[i], p[i + 1], p[i + 2], p[i + 3]
        i += 4
        w_blocks.append(pad_mat(w))
        v_rows += [pad_vec(b), pad_vec(g, 1.0), pad_vec(be)]

    # embed_a + norm_a : split Wa into mean-half / std-half blocks
    wa, ba, ga, bea = p[i], p[i + 1], p[i + 2], p[i + 3]
    i += 4
    half = wa.shape[0] // 2
    w_blocks.append(pad_mat(wa[:half, :]))
    w_blocks.append(pad_mat(wa[half:, :]))
    v_rows += [pad_vec(ba), pad_vec(ga, 1.0), pad_vec(bea)]

    # embed_b + norm_b
    wb, bb, gb, beb = p[i], p[i + 1], p[i + 2], p[i + 3]
    i += 4
    w_blocks.append(pad_mat(wb))
    v_rows += [pad_vec(bb), pad_vec(gb, 1.0), pad_vec(beb)]

    # final Linear (padded classes get -1e30 bias -> masked out of the CE)
    wf, bf = p[i], p[i + 1]
    i += 2
    w_blocks.append(pad_mat(wf))
    v_rows.append(pad_vec(bf, NEG_BIG))

    assert i == len(p)
    w_blob = jnp.stack(w_blocks).astype(jnp.bfloat16)   # (n_blocks, 128, 128)
    v_blob = jnp.stack(v_rows).astype(jnp.float32)      # (n_rows, 128) f32
    return w_blob, v_blob


# --------------------------------- wrapper -----------------------------------

def xvector_loss(x, labels, params, splice_indexes):
    n, t, f = x.shape
    plan = build_plan(params, splice_indexes, f)

    # Total TDNN context == XvectorNet.extra_context.  StatsPooling std uses
    # the unbiased (n-1) divisor, so require >= 2 valid frames per utterance.
    left = sum(-min(0, min(ctx)) for (ctx, _, _, _) in plan)
    right = sum(max(0, max(ctx)) for (ctx, _, _, _) in plan)
    n_frames = t - left - right
    assert n_frames >= 2, "need >= 2 valid frames per utterance for StatsPooling"

    t_pad = -(-t // 16) * 16            # bf16 sublane packing (16 rows / vreg)
    rows = n * t_pad

    # Lane-dense, utterance-major bf16 frame slab: row r = utt * t_pad + frame.
    # bf16 halves the largest HBM DMA / VMEM buffer; matmuls consume bf16 and
    # accumulate in f32 (BN / pooling statistics stay f32).
    x_p = jnp.pad(x, ((0, 0), (0, t_pad - t), (0, 0))).reshape(rows, f)
    x_flat = jnp.zeros((rows, LANE), jnp.bfloat16).at[:, :f].set(
        x_p.astype(jnp.bfloat16))
    onehot = jax.nn.one_hot(labels, LANE, dtype=jnp.float32)

    # Host-precomputed lane-dense 0/1 rows (exact in bf16):
    #   rows [0, n_layers)            -> per-TDNN-layer BN validity masks
    #   rows [n_layers, n_layers + n) -> per-utterance pooling indicators
    frame = jnp.arange(rows, dtype=jnp.int32) % t_pad
    utt = jnp.arange(rows, dtype=jnp.int32) // t_pad
    v0, v1 = 0, t
    mask_rows = []
    for (ctx, _, _, _) in plan:
        v0, v1 = v0 - min(ctx), v1 - max(ctx)
        mask_rows.append(((frame >= v0) & (frame < v1)).astype(jnp.float32))
    for u in range(n):
        mask_rows.append(((utt == u) & (frame >= v0)
                          & (frame < v1)).astype(jnp.float32))
    aux = jnp.stack(mask_rows).astype(jnp.bfloat16)      # (n_layers+n, rows)

    w_blob, v_blob = pack_params(params, plan)
    kernel = make_xvector_kernel(plan, n, t_pad, t)

    n_frame_mm = sum(1 if packed else len(ctx)
                     for (ctx, _, _, packed) in plan) + 2
    n_skinny_mm = 2 * (len(plan) + 2) + 2                # BN stats + pooling
    flops = (2 * LANE * LANE * (n_frame_mm * rows + 5 * n)
             + 2 * LANE * rows * n_skinny_mm)
    total_in_bytes = sum(int(a.size) * a.dtype.itemsize
                         for a in (x_flat, onehot, aux, w_blob, v_blob))
    cost = pl.CostEstimate(
        flops=flops,
        transcendentals=(len(plan) + 4) * LANE + 3 * n * LANE,
        bytes_accessed=total_in_bytes + 4)

    # Explicit VMEM budget (default scoped limit is only 16/32 MiB): a few
    # live slab copies (z / a / h) plus the packed params, capped below the
    # v7x physical 64 MiB.
    slab_bytes = rows * LANE * 4                         # one f32 slab copy
    vmem_limit = int(min(56 * 2 ** 20,
                         max(8 * 2 ** 20,
                             6 * slab_bytes + 2 * total_in_bytes)))

    # TODO(synk): at production shapes (hidden=512, T~1000, batch>=16) this
    # whole-model-in-VMEM kernel must become a time-tiled grid: 'parallel'
    # batch/row axis (feeds v7x's 2 TensorCores), 'arbitrary' time axis with
    # halo rows for the TDNN context, 2-pass BN (masked sum/sumsq accumulated
    # in VMEM scratch, then a normalize pass), >=256-row tiles with K/N padded
    # to 256 on v6e/v7x, and pl.Buffered(3) on the x spec if DMA is exposed.
    return pl.pallas_call(
        kernel,
        out_shape=jax.ShapeDtypeStruct((1,), jnp.float32),
        in_specs=[pl.BlockSpec(memory_space=pltpu.MemorySpace.VMEM)] * 5,
        out_specs=pl.BlockSpec(memory_space=pltpu.MemorySpace.SMEM),
        compiler_params=pltpu.CompilerParams(vmem_limit_bytes=vmem_limit),
        cost_estimate=cost,
    )(x_flat, onehot, aux, w_blob, v_blob)


# ---------------------------- deterministic init ------------------------------

def init_params(key, input_size, hidden_size, output_size, embedding_size,
                num_classes, splice_indexes):
    params = []

    def linear(k, din, dout):
        k1, k2 = jax.random.split(k)
        W = jax.random.normal(k1, (din, dout), jnp.float32) / jnp.sqrt(float(din))
        b = jax.random.normal(k2, (1, dout), jnp.float32) * 0.01
        return W, b

    def bn(dout):
        return (jnp.ones((1, dout), jnp.float32),
                jnp.zeros((1, dout), jnp.float32))

    keys = list(jax.random.split(key, 8))
    ki = 0

    # TDNN + BN layers
    in_dim = input_size
    for ctx in splice_indexes:
        W, b = linear(keys[ki], in_dim * len(ctx), hidden_size); ki += 1
        params += [W, b, *bn(hidden_size)]
        in_dim = hidden_size

    # MLP (pre_stat): Linear(h,h)+ReLU+BN, Linear(h,o)+ReLU+BN
    W, b = linear(keys[ki], hidden_size, hidden_size); ki += 1
    params += [W, b, *bn(hidden_size)]
    W, b = linear(keys[ki], hidden_size, output_size); ki += 1
    params += [W, b, *bn(output_size)]

    # embed_a + norm_a
    W, b = linear(keys[ki], 2 * output_size, hidden_size); ki += 1
    params += [W, b, *bn(hidden_size)]
    # embed_b + norm_b
    W, b = linear(keys[ki], hidden_size, embedding_size); ki += 1
    params += [W, b, *bn(embedding_size)]
    # final
    W, b = linear(keys[ki], embedding_size, num_classes); ki += 1
    params += [W, b]
    return params


# ----------------------------------- main -------------------------------------

if __name__ == "__main__":
    # Small shapes consistent with the module.
    N, T, F = 2, 16, 16                     # batch, frames, input_size
    hidden_size = 32
    output_size = 32
    embedding_size = 32
    num_classes = 8
    splice_indexes = ((-1, 0, 1), (-1, 0, 1), (0,))   # total context (2, 2)

    key = jax.random.PRNGKey(0)
    kx, kl, kp = jax.random.split(key, 3)
    x = jax.random.normal(kx, (N, T, F), jnp.float32)
    labels = jax.random.randint(kl, (N,), 0, num_classes)

    params = init_params(kp, F, hidden_size, output_size, embedding_size,
                         num_classes, splice_indexes)

    loss = xvector_loss(x, labels, params, splice_indexes)
    loss = jax.block_until_ready(loss)
    assert bool(jnp.isfinite(loss).all()), "non-finite loss"
    print("KERNEL_OK")
</pallas_src>

<mosaic_0001>
module attributes {stable_mosaic.version = 11 : i64} {
  func.func @kernel(%arg0: memref<32x128xbf16, #tpu.memory_space<vmem>>, %arg1: memref<2x128xf32, #tpu.memory_space<vmem>>, %arg2: memref<5x32xbf16, #tpu.memory_space<vmem>>, %arg3: memref<9x128x128xbf16, #tpu.memory_space<vmem>>, %arg4: memref<22x128xf32, #tpu.memory_space<vmem>>, %arg5: memref<1xf32, #tpu.memory_space<smem>>) attributes {dimension_semantics = [], scalar_prefetch = 0 : i64, scratch_operands = 0 : i64, tpu.core_type = #tpu.core_type<tc>} {
    %c0 = arith.constant 0 : index
    %c0_0 = arith.constant 0 : index
    %0 = vector.load %arg0[%c0, %c0_0] : memref<32x128xbf16, #tpu.memory_space<vmem>>, vector<32x128xbf16>
    %c0_1 = arith.constant 0 : index
    %c0_2 = arith.constant 0 : index
    %c0_3 = arith.constant 0 : index
    %1 = vector.load %arg3[%c0_1, %c0_2, %c0_3] : memref<9x128x128xbf16, #tpu.memory_space<vmem>>, vector<1x128x128xbf16>
    %2 = vector.shape_cast %1 : vector<1x128x128xbf16> to vector<128x128xbf16>
    %cst = arith.constant dense<0.000000e+00> : vector<32x128xf32>
    %3 = tpu.matmul %0, %2, %cst {dimension_numbers = #tpu.dot_dimension_numbers<[1], [0], [0], [1], [0, 0, 1, 1], [], []>} : vector<32x128xbf16>, vector<128x128xbf16>, vector<32x128xf32> -> vector<32x128xf32>
    %c1_i32 = arith.constant 1 : i32
    %4 = tpu.dynamic_rotate %3 by %c1_i32 dim 0 : vector<32x128xf32>, i32 -> vector<32x128xf32>
    %c96_i32 = arith.constant 96 : i32
    %5 = tpu.dynamic_rotate %3 by %c96_i32 dim 1 : vector<32x128xf32>, i32 -> vector<32x128xf32>
    %6 = arith.addf %4, %5 : vector<32x128xf32>
    %c31_i32 = arith.constant 31 : i32
    %7 = tpu.dynamic_rotate %3 by %c31_i32 dim 0 : vector<32x128xf32>, i32 -> vector<32x128xf32>
    %c64_i32 = arith.constant 64 : i32
    %8 = tpu.dynamic_rotate %7 by %c64_i32 dim 1 : vector<32x128xf32>, i32 -> vector<32x128xf32>
    %9 = arith.addf %6, %8 : vector<32x128xf32>
    %c0_4 = arith.constant 0 : index
    %c0_5 = arith.constant 0 : index
    %10 = vector.load %arg4[%c0_4, %c0_5] : memref<22x128xf32, #tpu.memory_space<vmem>>, vector<1x128xf32>
    %c1 = arith.constant 1 : index
    %c0_6 = arith.constant 0 : index
    %11 = vector.load %arg4[%c1, %c0_6] : memref<22x128xf32, #tpu.memory_space<vmem>>, vector<1x128xf32>
    %c2 = arith.constant 2 : index
    %c0_7 = arith.constant 0 : index
    %12 = vector.load %arg4[%c2, %c0_7] : memref<22x128xf32, #tpu.memory_space<vmem>>, vector<1x128xf32>
    %13 = vector.broadcast %10 : vector<1x128xf32> to vector<32x128xf32>
    %14 = arith.addf %9, %13 : vector<32x128xf32>
    %cst_8 = arith.constant 0.000000e+00 : f32
    %15 = vector.broadcast %cst_8 : f32 to vector<32x128xf32>
    %16 = arith.maximumf %14, %15 : vector<32x128xf32>
    %17 = arith.truncf %16 : vector<32x128xf32> to vector<32x128xbf16>
    %c0_9 = arith.constant 0 : index
    %c0_10 = arith.constant 0 : index
    %18 = vector.load %arg2[%c0_9, %c0_10] : memref<5x32xbf16, #tpu.memory_space<vmem>>, vector<1x32xbf16>
    %cst_11 = arith.constant dense<0.000000e+00> : vector<1x128xf32>
    %19 = tpu.matmul %18, %17, %cst_11 {dimension_numbers = #tpu.dot_dimension_numbers<[1], [0], [0], [1], [0, 0, 1, 1], [], []>} : vector<1x32xbf16>, vector<32x128xbf16>, vector<1x128xf32> -> vector<1x128xf32>
    %20 = arith.mulf %17, %17 : vector<32x128xbf16>
    %cst_12 = arith.constant dense<0.000000e+00> : vector<1x128xf32>
    %21 = tpu.matmul %18, %20, %cst_12 {dimension_numbers = #tpu.dot_dimension_numbers<[1], [0], [0], [1], [0, 0, 1, 1], [], []>} : vector<1x32xbf16>, vector<32x128xbf16>, vector<1x128xf32> -> vector<1x128xf32>
    %cst_13 = arith.constant 0.0357142873 : f32
    %22 = vector.broadcast %cst_13 : f32 to vector<1x128xf32>
    %23 = arith.mulf %19, %22 : vector<1x128xf32>
    %cst_14 = arith.constant 0.0357142873 : f32
    %24 = vector.broadcast %cst_14 : f32 to vector<1x128xf32>
    %25 = arith.mulf %21, %24 : vector<1x128xf32>
    %26 = arith.mulf %23, %23 : vector<1x128xf32>
    %27 = arith.subf %25, %26 : vector<1x128xf32>
    %cst_15 = arith.constant 0.000000e+00 : f32
    %28 = vector.broadcast %cst_15 : f32 to vector<1x128xf32>
    %29 = arith.maximumf %27, %28 : vector<1x128xf32>
    %cst_16 = arith.constant 9.99999974E-6 : f32
    %30 = vector.broadcast %cst_16 : f32 to vector<1x128xf32>
    %31 = arith.addf %29, %30 : vector<1x128xf32>
    %32 = math.rsqrt %31 : vector<1x128xf32>
    %33 = arith.mulf %32, %11 : vector<1x128xf32>
    %34 = arith.mulf %23, %33 : vector<1x128xf32>
    %35 = arith.subf %12, %34 : vector<1x128xf32>
    %36 = arith.extf %17 : vector<32x128xbf16> to vector<32x128xf32>
    %37 = vector.broadcast %33 : vector<1x128xf32> to vector<32x128xf32>
    %38 = arith.mulf %36, %37 : vector<32x128xf32>
    %39 = vector.broadcast %35 : vector<1x128xf32> to vector<32x128xf32>
    %40 = arith.addf %38, %39 : vector<32x128xf32>
    %41 = arith.truncf %40 : vector<32x128xf32> to vector<32x128xbf16>
    %c1_17 = arith.constant 1 : index
    %c0_18 = arith.constant 0 : index
    %c0_19 = arith.constant 0 : index
    %42 = vector.load %arg3[%c1_17, %c0_18, %c0_19] : memref<9x128x128xbf16, #tpu.memory_space<vmem>>, vector<1x128x128xbf16>
    %43 = vector.shape_cast %42 : vector<1x128x128xbf16> to vector<128x128xbf16>
    %cst_20 = arith.constant dense<0.000000e+00> : vector<32x128xf32>
    %44 = tpu.matmul %41, %43, %cst_20 {dimension_numbers = #tpu.dot_dimension_numbers<[1], [0], [0], [1], [0, 0, 1, 1], [], []>} : vector<32x128xbf16>, vector<128x128xbf16>, vector<32x128xf32> -> vector<32x128xf32>
    %c1_i32_21 = arith.constant 1 : i32
    %45 = tpu.dynamic_rotate %44 by %c1_i32_21 dim 0 : vector<32x128xf32>, i32 -> vector<32x128xf32>
    %c96_i32_22 = arith.constant 96 : i32
    %46 = tpu.dynamic_rotate %44 by %c96_i32_22 dim 1 : vector<32x128xf32>, i32 -> vector<32x128xf32>
    %47 = arith.addf %45, %46 : vector<32x128xf32>
    %c31_i32_23 = arith.constant 31 : i32
    %48 = tpu.dynamic_rotate %44 by %c31_i32_23 dim 0 : vector<32x128xf32>, i32 -> vector<32x128xf32>
    %c64_i32_24 = arith.constant 64 : i32
    %49 = tpu.dynamic_rotate %48 by %c64_i32_24 dim 1 : vector<32x128xf32>, i32 -> vector<32x128xf32>
    %50 = arith.addf %47, %49 : vector<32x128xf32>
    %c3 = arith.constant 3 : index
    %c0_25 = arith.constant 0 : index
    %51 = vector.load %arg4[%c3, %c0_25] : memref<22x128xf32, #tpu.memory_space<vmem>>, vector<1x128xf32>
    %c4 = arith.constant 4 : index
    %c0_26 = arith.constant 0 : index
    %52 = vector.load %arg4[%c4, %c0_26] : memref<22x128xf32, #tpu.memory_space<vmem>>, vector<1x128xf32>
    %c5 = arith.constant 5 : index
    %c0_27 = arith.constant 0 : index
    %53 = vector.load %arg4[%c5, %c0_27] : memref<22x128xf32, #tpu.memory_space<vmem>>, vector<1x128xf32>
    %54 = vector.broadcast %51 : vector<1x128xf32> to vector<32x128xf32>
    %55 = arith.addf %50, %54 : vector<32x128xf32>
    %cst_28 = arith.constant 0.000000e+00 : f32
    %56 = vector.broadcast %cst_28 : f32 to vector<32x128xf32>
    %57 = arith.maximumf %55, %56 : vector<32x128xf32>
    %58 = arith.truncf %57 : vector<32x128xf32> to vector<32x128xbf16>
    %c1_29 = arith.constant 1 : index
    %c0_30 = arith.constant 0 : index
    %59 = vector.load %arg2[%c1_29, %c0_30] : memref<5x32xbf16, #tpu.memory_space<vmem>>, vector<1x32xbf16>
    %cst_31 = arith.constant dense<0.000000e+00> : vector<1x128xf32>
    %60 = tpu.matmul %59, %58, %cst_31 {dimension_numbers = #tpu.dot_dimension_numbers<[1], [0], [0], [1], [0, 0, 1, 1], [], []>} : vector<1x32xbf16>, vector<32x128xbf16>, vector<1x128xf32> -> vector<1x128xf32>
    %61 = arith.mulf %58, %58 : vector<32x128xbf16>
    %cst_32 = arith.constant dense<0.000000e+00> : vector<1x128xf32>
    %62 = tpu.matmul %59, %61, %cst_32 {dimension_numbers = #tpu.dot_dimension_numbers<[1], [0], [0], [1], [0, 0, 1, 1], [], []>} : vector<1x32xbf16>, vector<32x128xbf16>, vector<1x128xf32> -> vector<1x128xf32>
    %cst_33 = arith.constant 0.0416666679 : f32
    %63 = vector.broadcast %cst_33 : f32 to vector<1x128xf32>
    %64 = arith.mulf %60, %63 : vector<1x128xf32>
    %cst_34 = arith.constant 0.0416666679 : f32
    %65 = vector.broadcast %cst_34 : f32 to vector<1x128xf32>
    %66 = arith.mulf %62, %65 : vector<1x128xf32>
    %67 = arith.mulf %64, %64 : vector<1x128xf32>
    %68 = arith.subf %66, %67 : vector<1x128xf32>
    %cst_35 = arith.constant 0.000000e+00 : f32
    %69 = vector.broadcast %cst_35 : f32 to vector<1x128xf32>
    %70 = arith.maximumf %68, %69 : vector<1x128xf32>
    %cst_36 = arith.constant 9.99999974E-6 : f32
    %71 = vector.broadcast %cst_36 : f32 to vector<1x128xf32>
    %72 = arith.addf %70, %71 : vector<1x128xf32>
    %73 = math.rsqrt %72 : vector<1x128xf32>
    %74 = arith.mulf %73, %52 : vector<1x128xf32>
    %75 = arith.mulf %64, %74 : vector<1x128xf32>
    %76 = arith.subf %53, %75 : vector<1x128xf32>
    %77 = arith.extf %58 : vector<32x128xbf16> to vector<32x128xf32>
    %78 = vector.broadcast %74 : vector<1x128xf32> to vector<32x128xf32>
    %79 = arith.mulf %77, %78 : vector<32x128xf32>
    %80 = vector.broadcast %76 : vector<1x128xf32> to vector<32x128xf32>
    %81 = arith.addf %79, %80 : vector<32x128xf32>
    %82 = arith.truncf %81 : vector<32x128xf32> to vector<32x128xbf16>
    %c2_37 = arith.constant 2 : index
    %c0_38 = arith.constant 0 : index
    %c0_39 = arith.constant 0 : index
    %83 = vector.load %arg3[%c2_37, %c0_38, %c0_39] : memref<9x128x128xbf16, #tpu.memory_space<vmem>>, vector<1x128x128xbf16>
    %84 = vector.shape_cast %83 : vector<1x128x128xbf16> to vector<128x128xbf16>
    %cst_40 = arith.constant dense<0.000000e+00> : vector<32x128xf32>
    %85 = tpu.matmul %82, %84, %cst_40 {dimension_numbers = #tpu.dot_dimension_numbers<[1], [0], [0], [1], [0, 0, 1, 1], [], []>} : vector<32x128xbf16>, vector<128x128xbf16>, vector<32x128xf32> -> vector<32x128xf32>
    %c6 = arith.constant 6 : index
    %c0_41 = arith.constant 0 : index
    %86 = vector.load %arg4[%c6, %c0_41] : memref<22x128xf32, #tpu.memory_space<vmem>>, vector<1x128xf32>
    %c7 = arith.constant 7 : index
    %c0_42 = arith.constant 0 : index
    %87 = vector.load %arg4[%c7, %c0_42] : memref<22x128xf32, #tpu.memory_space<vmem>>, vector<1x128xf32>
    %c8 = arith.constant 8 : index
    %c0_43 = arith.constant 0 : index
    %88 = vector.load %arg4[%c8, %c0_43] : memref<22x128xf32, #tpu.memory_space<vmem>>, vector<1x128xf32>
    %89 = vector.broadcast %86 : vector<1x128xf32> to vector<32x128xf32>
    %90 = arith.addf %85, %89 : vector<32x128xf32>
    %cst_44 = arith.constant 0.000000e+00 : f32
    %91 = vector.broadcast %cst_44 : f32 to vector<32x128xf32>
    %92 = arith.maximumf %90, %91 : vector<32x128xf32>
    %93 = arith.truncf %92 : vector<32x128xf32> to vector<32x128xbf16>
    %c2_45 = arith.constant 2 : index
    %c0_46 = arith.constant 0 : index
    %94 = vector.load %arg2[%c2_45, %c0_46] : memref<5x32xbf16, #tpu.memory_space<vmem>>, vector<1x32xbf16>
    %cst_47 = arith.constant dense<0.000000e+00> : vector<1x128xf32>
    %95 = tpu.matmul %94, %93, %cst_47 {dimension_numbers = #tpu.dot_dimension_numbers<[1], [0], [0], [1], [0, 0, 1, 1], [], []>} : vector<1x32xbf16>, vector<32x128xbf16>, vector<1x128xf32> -> vector<1x128xf32>
    %96 = arith.mulf %93, %93 : vector<32x128xbf16>
    %cst_48 = arith.constant dense<0.000000e+00> : vector<1x128xf32>
    %97 = tpu.matmul %94, %96, %cst_48 {dimension_numbers = #tpu.dot_dimension_numbers<[1], [0], [0], [1], [0, 0, 1, 1], [], []>} : vector<1x32xbf16>, vector<32x128xbf16>, vector<1x128xf32> -> vector<1x128xf32>
    %cst_49 = arith.constant 0.0416666679 : f32
    %98 = vector.broadcast %cst_49 : f32 to vector<1x128xf32>
    %99 = arith.mulf %95, %98 : vector<1x128xf32>
    %cst_50 = arith.constant 0.0416666679 : f32
    %100 = vector.broadcast %cst_50 : f32 to vector<1x128xf32>
    %101 = arith.mulf %97, %100 : vector<1x128xf32>
    %102 = arith.mulf %99, %99 : vector<1x128xf32>
    %103 = arith.subf %101, %102 : vector<1x128xf32>
    %cst_51 = arith.constant 0.000000e+00 : f32
    %104 = vector.broadcast %cst_51 : f32 to vector<1x128xf32>
    %105 = arith.maximumf %103, %104 : vector<1x128xf32>
    %cst_52 = arith.constant 9.99999974E-6 : f32
    %106 = vector.broadcast %cst_52 : f32 to vector<1x128xf32>
    %107 = arith.addf %105, %106 : vector<1x128xf32>
    %108 = math.rsqrt %107 : vector<1x128xf32>
    %109 = arith.mulf %108, %87 : vector<1x128xf32>
    %110 = arith.mulf %99, %109 : vector<1x128xf32>
    %111 = arith.subf %88, %110 : vector<1x128xf32>
    %112 = arith.extf %93 : vector<32x128xbf16> to vector<32x128xf32>
    %113 = vector.broadcast %109 : vector<1x128xf32> to vector<32x128xf32>
    %114 = arith.mulf %112, %113 : vector<32x128xf32>
    %115 = vector.broadcast %111 : vector<1x128xf32> to vector<32x128xf32>
    %116 = arith.addf %114, %115 : vector<32x128xf32>
    %117 = arith.truncf %116 : vector<32x128xf32> to vector<32x128xbf16>
    %c2_53 = arith.constant 2 : index
    %c0_54 = arith.constant 0 : index
    %118 = vector.load %arg2[%c2_53, %c0_54] : memref<5x32xbf16, #tpu.memory_space<vmem>>, vector<1x32xbf16>
    %c3_55 = arith.constant 3 : index
    %c0_56 = arith.constant 0 : index
    %c0_57 = arith.constant 0 : index
    %119 = vector.load %arg3[%c3_55, %c0_56, %c0_57] : memref<9x128x128xbf16, #tpu.memory_space<vmem>>, vector<1x128x128xbf16>
    %120 = vector.shape_cast %119 : vector<1x128x128xbf16> to vector<128x128xbf16>
    %cst_58 = arith.constant dense<0.000000e+00> : vector<32x128xf32>
    %121 = tpu.matmul %117, %120, %cst_58 {dimension_numbers = #tpu.dot_dimension_numbers<[1], [0], [0], [1], [0, 0, 1, 1], [], []>} : vector<32x128xbf16>, vector<128x128xbf16>, vector<32x128xf32> -> vector<32x128xf32>
    %c9 = arith.constant 9 : index
    %c0_59 = arith.constant 0 : index
    %122 = vector.load %arg4[%c9, %c0_59] : memref<22x128xf32, #tpu.memory_space<vmem>>, vector<1x128xf32>
    %c10 = arith.constant 10 : index
    %c0_60 = arith.constant 0 : index
    %123 = vector.load %arg4[%c10, %c0_60] : memref<22x128xf32, #tpu.memory_space<vmem>>, vector<1x128xf32>
    %c11 = arith.constant 11 : index
    %c0_61 = arith.constant 0 : index
    %124 = vector.load %arg4[%c11, %c0_61] : memref<22x128xf32, #tpu.memory_space<vmem>>, vector<1x128xf32>
    %125 = vector.broadcast %122 : vector<1x128xf32> to vector<32x128xf32>
    %126 = arith.addf %121, %125 : vector<32x128xf32>
    %cst_62 = arith.constant 0.000000e+00 : f32
    %127 = vector.broadcast %cst_62 : f32 to vector<32x128xf32>
    %128 = arith.maximumf %126, %127 : vector<32x128xf32>
    %129 = arith.truncf %128 : vector<32x128xf32> to vector<32x128xbf16>
    %cst_63 = arith.constant dense<0.000000e+00> : vector<1x128xf32>
    %130 = tpu.matmul %118, %129, %cst_63 {dimension_numbers = #tpu.dot_dimension_numbers<[1], [0], [0], [1], [0, 0, 1, 1], [], []>} : vector<1x32xbf16>, vector<32x128xbf16>, vector<1x128xf32> -> vector<1x128xf32>
    %131 = arith.mulf %129, %129 : vector<32x128xbf16>
    %cst_64 = arith.constant dense<0.000000e+00> : vector<1x128xf32>
    %132 = tpu.matmul %118, %131, %cst_64 {dimension_numbers = #tpu.dot_dimension_numbers<[1], [0], [0], [1], [0, 0, 1, 1], [], []>} : vector<1x32xbf16>, vector<32x128xbf16>, vector<1x128xf32> -> vector<1x128xf32>
    %cst_65 = arith.constant 0.0416666679 : f32
    %133 = vector.broadcast %cst_65 : f32 to vector<1x128xf32>
    %134 = arith.mulf %130, %133 : vector<1x128xf32>
    %cst_66 = arith.constant 0.0416666679 : f32
    %135 = vector.broadcast %cst_66 : f32 to vector<1x128xf32>
    %136 = arith.mulf %132, %135 : vector<1x128xf32>
    %137 = arith.mulf %134, %134 : vector<1x128xf32>
    %138 = arith.subf %136, %137 : vector<1x128xf32>
    %cst_67 = arith.constant 0.000000e+00 : f32
    %139 = vector.broadcast %cst_67 : f32 to vector<1x128xf32>
    %140 = arith.maximumf %138, %139 : vector<1x128xf32>
    %cst_68 = arith.constant 9.99999974E-6 : f32
    %141 = vector.broadcast %cst_68 : f32 to vector<1x128xf32>
    %142 = arith.addf %140, %141 : vector<1x128xf32>
    %143 = math.rsqrt %142 : vector<1x128xf32>
    %144 = arith.mulf %143, %123 : vector<1x128xf32>
    %145 = arith.mulf %134, %144 : vector<1x128xf32>
    %146 = arith.subf %124, %145 : vector<1x128xf32>
    %147 = arith.extf %129 : vector<32x128xbf16> to vector<32x128xf32>
    %148 = vector.broadcast %144 : vector<1x128xf32> to vector<32x128xf32>
    %149 = arith.mulf %147, %148 : vector<32x128xf32>
    %150 = vector.broadcast %146 : vector<1x128xf32> to vector<32x128xf32>
    %151 = arith.addf %149, %150 : vector<32x128xf32>
    %152 = arith.truncf %151 : vector<32x128xf32> to vector<32x128xbf16>
    %c4_69 = arith.constant 4 : index
    %c0_70 = arith.constant 0 : index
    %c0_71 = arith.constant 0 : index
    %153 = vector.load %arg3[%c4_69, %c0_70, %c0_71] : memref<9x128x128xbf16, #tpu.memory_space<vmem>>, vector<1x128x128xbf16>
    %154 = vector.shape_cast %153 : vector<1x128x128xbf16> to vector<128x128xbf16>
    %cst_72 = arith.constant dense<0.000000e+00> : vector<32x128xf32>
    %155 = tpu.matmul %152, %154, %cst_72 {dimension_numbers = #tpu.dot_dimension_numbers<[1], [0], [0], [1], [0, 0, 1, 1], [], []>} : vector<32x128xbf16>, vector<128x128xbf16>, vector<32x128xf32> -> vector<32x128xf32>
    %c12 = arith.constant 12 : index
    %c0_73 = arith.constant 0 : index
    %156 = vector.load %arg4[%c12, %c0_73] : memref<22x128xf32, #tpu.memory_space<vmem>>, vector<1x128xf32>
    %c13 = arith.constant 13 : index
    %c0_74 = arith.constant 0 : index
    %157 = vector.load %arg4[%c13, %c0_74] : memref<22x128xf32, #tpu.memory_space<vmem>>, vector<1x128xf32>
    %c14 = arith.constant 14 : index
    %c0_75 = arith.constant 0 : index
    %158 = vector.load %arg4[%c14, %c0_75] : memref<22x128xf32, #tpu.memory_space<vmem>>, vector<1x128xf32>
    %159 = vector.broadcast %156 : vector<1x128xf32> to vector<32x128xf32>
    %160 = arith.addf %155, %159 : vector<32x128xf32>
    %cst_76 = arith.constant 0.000000e+00 : f32
    %161 = vector.broadcast %cst_76 : f32 to vector<32x128xf32>
    %162 = arith.maximumf %160, %161 : vector<32x128xf32>
    %163 = arith.truncf %162 : vector<32x128xf32> to vector<32x128xbf16>
    %cst_77 = arith.constant dense<0.000000e+00> : vector<1x128xf32>
    %164 = tpu.matmul %118, %163, %cst_77 {dimension_numbers = #tpu.dot_dimension_numbers<[1], [0], [0], [1], [0, 0, 1, 1], [], []>} : vector<1x32xbf16>, vector<32x128xbf16>, vector<1x128xf32> -> vector<1x128xf32>
    %165 = arith.mulf %163, %163 : vector<32x128xbf16>
    %cst_78 = arith.constant dense<0.000000e+00> : vector<1x128xf32>
    %166 = tpu.matmul %118, %165, %cst_78 {dimension_numbers = #tpu.dot_dimension_numbers<[1], [0], [0], [1], [0, 0, 1, 1], [], []>} : vector<1x32xbf16>, vector<32x128xbf16>, vector<1x128xf32> -> vector<1x128xf32>
    %cst_79 = arith.constant 0.0416666679 : f32
    %167 = vector.broadcast %cst_79 : f32 to vector<1x128xf32>
    %168 = arith.mulf %164, %167 : vector<1x128xf32>
    %cst_80 = arith.constant 0.0416666679 : f32
    %169 = vector.broadcast %cst_80 : f32 to vector<1x128xf32>
    %170 = arith.mulf %166, %169 : vector<1x128xf32>
    %171 = arith.mulf %168, %168 : vector<1x128xf32>
    %172 = arith.subf %170, %171 : vector<1x128xf32>
    %cst_81 = arith.constant 0.000000e+00 : f32
    %173 = vector.broadcast %cst_81 : f32 to vector<1x128xf32>
    %174 = arith.maximumf %172, %173 : vector<1x128xf32>
    %cst_82 = arith.constant 9.99999974E-6 : f32
    %175 = vector.broadcast %cst_82 : f32 to vector<1x128xf32>
    %176 = arith.addf %174, %175 : vector<1x128xf32>
    %177 = math.rsqrt %176 : vector<1x128xf32>
    %178 = arith.mulf %177, %157 : vector<1x128xf32>
    %179 = arith.mulf %168, %178 : vector<1x128xf32>
    %180 = arith.subf %158, %179 : vector<1x128xf32>
    %181 = arith.extf %163 : vector<32x128xbf16> to vector<32x128xf32>
    %182 = vector.broadcast %178 : vector<1x128xf32> to vector<32x128xf32>
    %183 = arith.mulf %181, %182 : vector<32x128xf32>
    %184 = vector.broadcast %180 : vector<1x128xf32> to vector<32x128xf32>
    %185 = arith.addf %183, %184 : vector<32x128xf32>
    %186 = arith.truncf %185 : vector<32x128xf32> to vector<32x128xbf16>
    %c3_83 = arith.constant 3 : index
    %c0_84 = arith.constant 0 : index
    %187 = vector.load %arg2[%c3_83, %c0_84] : memref<5x32xbf16, #tpu.memory_space<vmem>>, vector<2x32xbf16>
    %cst_85 = arith.constant dense<0.000000e+00> : vector<2x128xf32>
    %188 = tpu.matmul %187, %186, %cst_85 {dimension_numbers = #tpu.dot_dimension_numbers<[1], [0], [0], [1], [0, 0, 1, 1], [], []>} : vector<2x32xbf16>, vector<32x128xbf16>, vector<2x128xf32> -> vector<2x128xf32>
    %189 = arith.mulf %186, %186 : vector<32x128xbf16>
    %cst_86 = arith.constant dense<0.000000e+00> : vector<2x128xf32>
    %190 = tpu.matmul %187, %189, %cst_86 {dimension_numbers = #tpu.dot_dimension_numbers<[1], [0], [0], [1], [0, 0, 1, 1], [], []>} : vector<2x32xbf16>, vector<32x128xbf16>, vector<2x128xf32> -> vector<2x128xf32>
    %cst_87 = arith.constant 0.0833333358 : f32
    %191 = vector.broadcast %cst_87 : f32 to vector<2x128xf32>
    %192 = arith.mulf %188, %191 : vector<2x128xf32>
    %cst_88 = arith.constant 0.0833333358 : f32
    %193 = vector.broadcast %cst_88 : f32 to vector<2x128xf32>
    %194 = arith.mulf %190, %193 : vector<2x128xf32>
    %195 = arith.mulf %192, %192 : vector<2x128xf32>
    %196 = arith.subf %194, %195 : vector<2x128xf32>
    %cst_89 = arith.constant 0.000000e+00 : f32
    %197 = vector.broadcast %cst_89 : f32 to vector<2x128xf32>
    %198 = arith.maximumf %196, %197 : vector<2x128xf32>
    %cst_90 = arith.constant 1.09090912 : f32
    %199 = vector.broadcast %cst_90 : f32 to vector<2x128xf32>
    %200 = arith.mulf %198, %199 : vector<2x128xf32>
    %201 = math.sqrt %200 : vector<2x128xf32>
    %202 = arith.truncf %192 : vector<2x128xf32> to vector<2x128xbf16>
    %c5_91 = arith.constant 5 : index
    %c0_92 = arith.constant 0 : index
    %c0_93 = arith.constant 0 : index
    %203 = vector.load %arg3[%c5_91, %c0_92, %c0_93] : memref<9x128x128xbf16, #tpu.memory_space<vmem>>, vector<1x128x128xbf16>
    %204 = vector.shape_cast %203 : vector<1x128x128xbf16> to vector<128x128xbf16>
    %cst_94 = arith.constant dense<0.000000e+00> : vector<2x128xf32>
    %205 = tpu.matmul %202, %204, %cst_94 {dimension_numbers = #tpu.dot_dimension_numbers<[1], [0], [0], [1], [0, 0, 1, 1], [], []>} : vector<2x128xbf16>, vector<128x128xbf16>, vector<2x128xf32> -> vector<2x128xf32>
    %206 = arith.truncf %201 : vector<2x128xf32> to vector<2x128xbf16>
    %c6_95 = arith.constant 6 : index
    %c0_96 = arith.constant 0 : index
    %c0_97 = arith.constant 0 : index
    %207 = vector.load %arg3[%c6_95, %c0_96, %c0_97] : memref<9x128x128xbf16, #tpu.memory_space<vmem>>, vector<1x128x128xbf16>
    %208 = vector.shape_cast %207 : vector<1x128x128xbf16> to vector<128x128xbf16>
    %cst_98 = arith.constant dense<0.000000e+00> : vector<2x128xf32>
    %209 = tpu.matmul %206, %208, %cst_98 {dimension_numbers = #tpu.dot_dimension_numbers<[1], [0], [0], [1], [0, 0, 1, 1], [], []>} : vector<2x128xbf16>, vector<128x128xbf16>, vector<2x128xf32> -> vector<2x128xf32>
    %210 = arith.addf %205, %209 : vector<2x128xf32>
    %c15 = arith.constant 15 : index
    %c0_99 = arith.constant 0 : index
    %211 = vector.load %arg4[%c15, %c0_99] : memref<22x128xf32, #tpu.memory_space<vmem>>, vector<1x128xf32>
    %c16 = arith.constant 16 : index
    %c0_100 = arith.constant 0 : index
    %212 = vector.load %arg4[%c16, %c0_100] : memref<22x128xf32, #tpu.memory_space<vmem>>, vector<1x128xf32>
    %c17 = arith.constant 17 : index
    %c0_101 = arith.constant 0 : index
    %213 = vector.load %arg4[%c17, %c0_101] : memref<22x128xf32, #tpu.memory_space<vmem>>, vector<1x128xf32>
    %214 = vector.broadcast %211 : vector<1x128xf32> to vector<2x128xf32>
    %215 = arith.addf %210, %214 : vector<2x128xf32>
    %cst_102 = arith.constant 0.000000e+00 : f32
    %216 = vector.broadcast %cst_102 : f32 to vector<2x128xf32>
    %217 = arith.maximumf %215, %216 : vector<2x128xf32>
    %cst_103 = arith.constant dense<0.000000e+00> : vector<128xf32>
    %218 = vector.multi_reduction <add>, %217, %cst_103 [0] : vector<2x128xf32> to vector<128xf32>
    %219 = vector.shape_cast %218 : vector<128xf32> to vector<1x128xf32>
    %cst_104 = arith.constant 5.000000e-01 : f32
    %220 = vector.broadcast %cst_104 : f32 to vector<1x128xf32>
    %221 = arith.mulf %219, %220 : vector<1x128xf32>
    %222 = vector.broadcast %221 : vector<1x128xf32> to vector<2x128xf32>
    %223 = arith.subf %217, %222 : vector<2x128xf32>
    %224 = arith.mulf %223, %223 : vector<2x128xf32>
    %cst_105 = arith.constant dense<0.000000e+00> : vector<128xf32>
    %225 = vector.multi_reduction <add>, %224, %cst_105 [0] : vector<2x128xf32> to vector<128xf32>
    %226 = vector.shape_cast %225 : vector<128xf32> to vector<1x128xf32>
    %cst_106 = arith.constant 5.000000e-01 : f32
    %227 = vector.broadcast %cst_106 : f32 to vector<1x128xf32>
    %228 = arith.mulf %226, %227 : vector<1x128xf32>
    %cst_107 = arith.constant 9.99999974E-6 : f32
    %229 = vector.broadcast %cst_107 : f32 to vector<1x128xf32>
    %230 = arith.addf %228, %229 : vector<1x128xf32>
    %231 = math.rsqrt %230 : vector<1x128xf32>
    %232 = vector.broadcast %231 : vector<1x128xf32> to vector<2x128xf32>
    %233 = arith.mulf %223, %232 : vector<2x128xf32>
    %234 = vector.broadcast %212 : vector<1x128xf32> to vector<2x128xf32>
    %235 = arith.mulf %233, %234 : vector<2x128xf32>
    %236 = vector.broadcast %213 : vector<1x128xf32> to vector<2x128xf32>
    %237 = arith.addf %235, %236 : vector<2x128xf32>
    %238 = arith.truncf %237 : vector<2x128xf32> to vector<2x128xbf16>
    %c7_108 = arith.constant 7 : index
    %c0_109 = arith.constant 0 : index
    %c0_110 = arith.constant 0 : index
    %239 = vector.load %arg3[%c7_108, %c0_109, %c0_110] : memref<9x128x128xbf16, #tpu.memory_space<vmem>>, vector<1x128x128xbf16>
    %240 = vector.shape_cast %239 : vector<1x128x128xbf16> to vector<128x128xbf16>
    %cst_111 = arith.constant dense<0.000000e+00> : vector<2x128xf32>
    %241 = tpu.matmul %238, %240, %cst_111 {dimension_numbers = #tpu.dot_dimension_numbers<[1], [0], [0], [1], [0, 0, 1, 1], [], []>} : vector<2x128xbf16>, vector<128x128xbf16>, vector<2x128xf32> -> vector<2x128xf32>
    %c18 = arith.constant 18 : index
    %c0_112 = arith.constant 0 : index
    %242 = vector.load %arg4[%c18, %c0_112] : memref<22x128xf32, #tpu.memory_space<vmem>>, vector<1x128xf32>
    %c19 = arith.constant 19 : index
    %c0_113 = arith.constant 0 : index
    %243 = vector.load %arg4[%c19, %c0_113] : memref<22x128xf32, #tpu.memory_space<vmem>>, vector<1x128xf32>
    %c20 = arith.constant 20 : index
    %c0_114 = arith.constant 0 : index
    %244 = vector.load %arg4[%c20, %c0_114] : memref<22x128xf32, #tpu.memory_space<vmem>>, vector<1x128xf32>
    %245 = vector.broadcast %242 : vector<1x128xf32> to vector<2x128xf32>
    %246 = arith.addf %241, %245 : vector<2x128xf32>
    %cst_115 = arith.constant 0.000000e+00 : f32
    %247 = vector.broadcast %cst_115 : f32 to vector<2x128xf32>
    %248 = arith.maximumf %246, %247 : vector<2x128xf32>
    %cst_116 = arith.constant dense<0.000000e+00> : vector<128xf32>
    %249 = vector.multi_reduction <add>, %248, %cst_116 [0] : vector<2x128xf32> to vector<128xf32>
    %250 = vector.shape_cast %249 : vector<128xf32> to vector<1x128xf32>
    %cst_117 = arith.constant 5.000000e-01 : f32
    %251 = vector.broadcast %cst_117 : f32 to vector<1x128xf32>
    %252 = arith.mulf %250, %251 : vector<1x128xf32>
    %253 = vector.broadcast %252 : vector<1x128xf32> to vector<2x128xf32>
    %254 = arith.subf %248, %253 : vector<2x128xf32>
    %255 = arith.mulf %254, %254 : vector<2x128xf32>
    %cst_118 = arith.constant dense<0.000000e+00> : vector<128xf32>
    %256 = vector.multi_reduction <add>, %255, %cst_118 [0] : vector<2x128xf32> to vector<128xf32>
    %257 = vector.shape_cast %256 : vector<128xf32> to vector<1x128xf32>
    %cst_119 = arith.constant 5.000000e-01 : f32
    %258 = vector.broadcast %cst_119 : f32 to vector<1x128xf32>
    %259 = arith.mulf %257, %258 : vector<1x128xf32>
    %cst_120 = arith.constant 9.99999974E-6 : f32
    %260 = vector.broadcast %cst_120 : f32 to vector<1x128xf32>
    %261 = arith.addf %259, %260 : vector<1x128xf32>
    %262 = math.rsqrt %261 : vector<1x128xf32>
    %263 = vector.broadcast %262 : vector<1x128xf32> to vector<2x128xf32>
    %264 = arith.mulf %254, %263 : vector<2x128xf32>
    %265 = vector.broadcast %243 : vector<1x128xf32> to vector<2x128xf32>
    %266 = arith.mulf %264, %265 : vector<2x128xf32>
    %267 = vector.broadcast %244 : vector<1x128xf32> to vector<2x128xf32>
    %268 = arith.addf %266, %267 : vector<2x128xf32>
    %269 = arith.truncf %268 : vector<2x128xf32> to vector<2x128xbf16>
    %c8_121 = arith.constant 8 : index
    %c0_122 = arith.constant 0 : index
    %c0_123 = arith.constant 0 : index
    %270 = vector.load %arg3[%c8_121, %c0_122, %c0_123] : memref<9x128x128xbf16, #tpu.memory_space<vmem>>, vector<1x128x128xbf16>
    %271 = vector.shape_cast %270 : vector<1x128x128xbf16> to vector<128x128xbf16>
    %cst_124 = arith.constant dense<0.000000e+00> : vector<2x128xf32>
    %272 = tpu.matmul %269, %271, %cst_124 {dimension_numbers = #tpu.dot_dimension_numbers<[1], [0], [0], [1], [0, 0, 1, 1], [], []>} : vector<2x128xbf16>, vector<128x128xbf16>, vector<2x128xf32> -> vector<2x128xf32>
    %c21 = arith.constant 21 : index
    %c0_125 = arith.constant 0 : index
    %273 = vector.load %arg4[%c21, %c0_125] : memref<22x128xf32, #tpu.memory_space<vmem>>, vector<1x128xf32>
    %274 = vector.broadcast %273 : vector<1x128xf32> to vector<2x128xf32>
    %275 = arith.addf %272, %274 : vector<2x128xf32>
    %cst_126 = arith.constant dense<0xFF800000> : vector<2xf32>
    %276 = vector.multi_reduction <maximumf>, %275, %cst_126 [1] : vector<2x128xf32> to vector<2xf32>
    %277 = vector.shape_cast %276 : vector<2xf32> to vector<2x1xf32>
    %278 = vector.broadcast %277 : vector<2x1xf32> to vector<2x128xf32>
    %279 = arith.subf %275, %278 : vector<2x128xf32>
    %280 = math.exp %279 : vector<2x128xf32>
    %cst_127 = arith.constant dense<0.000000e+00> : vector<2xf32>
    %281 = vector.multi_reduction <add>, %280, %cst_127 [1] : vector<2x128xf32> to vector<2xf32>
    %282 = vector.shape_cast %281 : vector<2xf32> to vector<2x1xf32>
    %283 = math.log %282 : vector<2x1xf32>
    %284 = arith.addf %277, %283 : vector<2x1xf32>
    %c0_128 = arith.constant 0 : index
    %c0_129 = arith.constant 0 : index
    %285 = vector.load %arg1[%c0_128, %c0_129] : memref<2x128xf32, #tpu.memory_space<vmem>>, vector<2x128xf32>
    %286 = arith.mulf %285, %275 : vector<2x128xf32>
    %cst_130 = arith.constant dense<0.000000e+00> : vector<2xf32>
    %287 = vector.multi_reduction <add>, %286, %cst_130 [1] : vector<2x128xf32> to vector<2xf32>
    %288 = vector.shape_cast %287 : vector<2xf32> to vector<2x1xf32>
    %289 = arith.subf %284, %288 : vector<2x1xf32>
    %290 = vector.shape_cast %289 : vector<2x1xf32> to vector<1x2x1xf32>
    %cst_131 = arith.constant dense<0.000000e+00> : vector<1xf32>
    %291 = vector.multi_reduction <add>, %290, %cst_131 [1, 2] : vector<1x2x1xf32> to vector<1xf32>
    %292 = vector.shape_cast %291 : vector<1xf32> to vector<1x1x1xf32>
    %293 = vector.extract %292[0, 0, 0] : f32 from vector<1x1x1xf32>
    %cst_132 = arith.constant 5.000000e-01 : f32
    %294 = arith.mulf %293, %cst_132 : f32
    %c0_133 = arith.constant 0 : index
    %295 = memref.load %arg5[%c0_133] : memref<1xf32, #tpu.memory_space<smem>>
    memref.store %294, %arg5[%c0_133] : memref<1xf32, #tpu.memory_space<smem>>
    return
  }
}

</mosaic_0001>

<llo_original>
// kernel: tpu_custom_call.1
$region0: #{tpu_custom_call.1}
  #allocation0 [shape = 'u32[]', space=smem, size = 0x4, offset = 0x4, fixed_abs, tag = 'smem constant byte address 0x4 - core index']
  #allocation1 [shape = 'u32[144,128]{1,0:T(1,128)}', space=vmem, size = 0x12000, scoped, tag = 'internal scratch']
  %s0 = inlined_call_operand.hbm [shape: bf16[32,128], index: 0, kind: input, shape index: {}]
  %s1 = inlined_call_operand.vmem [shape: f32[2,128], index: 1, kind: input, shape index: {}]
  %s2 = inlined_call_operand.vmem [shape: bf16[5,32], index: 2, kind: input, shape index: {}]
  %s3 = inlined_call_operand.hbm [shape: bf16[9,128,128], index: 3, kind: input, shape index: {}]
  %s4 = inlined_call_operand.hbm [shape: f32[22,128], index: 4, kind: input, shape index: {}]
  %s5 = inlined_call_operand.hbm [shape: f32[1], index: 5, kind: output, shape index: {}]
  %s6 = sld [smem:[#allocation0]]
  $region42: #{tpu_custom_call.1} parent=0
    _
  %s8 = ssub.s32 1, %s6
  %s9 = scalar_select 0, %s8, %s6
  $region1: #{tpu_custom_call.1} parent=0
    #allocation2 [shape = 'u8[8192]{0}', space=vmem, size = 0x2000, scoped, tag = 'input window, operand 0, single buffered']
    #allocation3 [shape = 's32[1]{0}', space=sflag, size = 0x4, scoped, tag = 'scoped memory for tpu_custom_call.1']
    #allocation4 [shape = 's32[1]{0}', space=sflag, size = 0x4, scoped, tag = 'scoped memory for tpu_custom_call.1']
    #allocation5 [shape = 'u8[294912]{0}', space=vmem, size = 0x48000, scoped, tag = 'input window, operand 3, single buffered']
    #allocation6 [shape = 's32[1]{0}', space=sflag, size = 0x4, scoped, tag = 'scoped memory for tpu_custom_call.1']
    #allocation7 [shape = 'u8[12288]{0}', space=vmem, size = 0x3000, scoped, tag = 'input window, operand 4, single buffered']
    #allocation8 [shape = 'u8[512]{0}', space=smem, size = 0x200, scoped, tag = 'output window, operand 0, single buffered']
    %10 = vsyncpa [#allocation3], 0
    %11 = vsyncpa [#allocation6], 0
    %12 = vsyncpa [#allocation4], 0
    // Predicated region
    $region2: #{tpu_custom_call.1} parent=1 // pred_check
      _
    $region3: #{tpu_custom_call.1} parent=1 // pred_check_branch
      %14 = sbr.rel (0) target = $region5
    $region4: #{tpu_custom_call.1} parent=1 // pred_region
      %s16 = ssub.s32 256, 256
      %17 = vsyncadd [#allocation3], %s16
      %s18 = sshll.u32 [#allocation2], 4
      %s19 = int_to_ptr.vmem [resolvable:$true] %s18
      %24 = dma.hbm_to_vmem [thread:$0]  %s0, 256, %s19, [#allocation3], 64, 64, 4
    $region5: #{tpu_custom_call.1} parent=1 // pred_fallthru
      _
    // Predicated region
    $region6: #{tpu_custom_call.1} parent=1 // pred_check
      _
    $region7: #{tpu_custom_call.1} parent=1 // pred_check_branch
      %26 = sbr.rel (0) target = $region9
    $region8: #{tpu_custom_call.1} parent=1 // pred_region
      _
    $region9: #{tpu_custom_call.1} parent=1 // pred_fallthru
      _
    // Predicated region
    $region10: #{tpu_custom_call.1} parent=1 // pred_check
      _
    $region11: #{tpu_custom_call.1} parent=1 // pred_check_branch
      %28 = sbr.rel (0) target = $region13
    $region12: #{tpu_custom_call.1} parent=1 // pred_region
      _
    $region13: #{tpu_custom_call.1} parent=1 // pred_fallthru
      _
    // Predicated region
    $region14: #{tpu_custom_call.1} parent=1 // pred_check
      _
    $region15: #{tpu_custom_call.1} parent=1 // pred_check_branch
      %30 = sbr.rel (0) target = $region17
    $region16: #{tpu_custom_call.1} parent=1 // pred_region
      %s32 = ssub.s32 9216, 9216
      %33 = vsyncadd [#allocation6], %s32
      %s34 = sshll.u32 [#allocation5], 4
      %s35 = int_to_ptr.vmem [resolvable:$true] %s34
      %40 = dma.hbm_to_vmem [thread:$0]  %s3, 9216, %s35, [#allocation6], 64, 64, 4
    $region17: #{tpu_custom_call.1} parent=1 // pred_fallthru
      _
    // Predicated region
    $region18: #{tpu_custom_call.1} parent=1 // pred_check
      _
    $region19: #{tpu_custom_call.1} parent=1 // pred_check_branch
      %42 = sbr.rel (0) target = $region21
    $region20: #{tpu_custom_call.1} parent=1 // pred_region
      %s44 = ssub.s32 384, 384
      %45 = vsyncadd [#allocation6], %s44
      %s46 = sshll.u32 [#allocation7], 4
      %s47 = int_to_ptr.vmem [resolvable:$true] %s46
      %52 = dma.hbm_to_vmem [thread:$0]  %s4, 384, %s47, [#allocation6], 128, 128, 8
    $region21: #{tpu_custom_call.1} parent=1 // pred_fallthru
      _
    // Predicated region
    $region22: #{tpu_custom_call.1} parent=1 // pred_check
      _
    $region23: #{tpu_custom_call.1} parent=1 // pred_check_branch
      %54 = sbr.rel (0) target = $region25
    $region24: #{tpu_custom_call.1} parent=1 // pred_region
      %55 = dma.done [#allocation3], 256
    $region25: #{tpu_custom_call.1} parent=1 // pred_fallthru
      _
    // Predicated region
    $region26: #{tpu_custom_call.1} parent=1 // pred_check
      _
    $region27: #{tpu_custom_call.1} parent=1 // pred_check_branch
      %57 = sbr.rel (0) target = $region29
    $region28: #{tpu_custom_call.1} parent=1 // pred_region
      %58 = dma.done [#allocation6], 9216
    $region29: #{tpu_custom_call.1} parent=1 // pred_fallthru
      _
    // Predicated region
    $region30: #{tpu_custom_call.1} parent=1 // pred_check
      _
    $region31: #{tpu_custom_call.1} parent=1 // pred_check_branch
      %60 = sbr.rel (0) target = $region33
    $region32: #{tpu_custom_call.1} parent=1 // pred_region
      %61 = dma.done [#allocation6], 384
    $region33: #{tpu_custom_call.1} parent=1 // pred_fallthru
      _
    %v63 = vld [vmem:[#allocation2] sm:$0xf]
    %v64 = vld [vmem:[#allocation2 + $0x4] sm:$0xf]
    %v65 = vld [vmem:[#allocation2 + $0x8] sm:$0xf]
    %v66 = vld [vmem:[#allocation2 + $0xc] sm:$0xf]
    %v67 = vld [vmem:[#allocation5] sm:$0xf]
    %v68 = vld [vmem:[#allocation5 + $0x4] sm:$0xf]
    %v69 = vld [vmem:[#allocation5 + $0x8] sm:$0xf]
    %v70 = vld [vmem:[#allocation5 + $0xc] sm:$0xf]
    %v71 = vld [vmem:[#allocation5 + $0x10] sm:$0xf]
    %v72 = vld [vmem:[#allocation5 + $0x14] sm:$0xf]
    %v73 = vld [vmem:[#allocation5 + $0x18] sm:$0xf]
    %v74 = vld [vmem:[#allocation5 + $0x1c] sm:$0xf]
    %v75 = vld [vmem:[#allocation5 + $0x20] sm:$0xf]
    %v76 = vld [vmem:[#allocation5 + $0x24] sm:$0xf]
    %v77 = vld [vmem:[#allocation5 + $0x28] sm:$0xf]
    %v78 = vld [vmem:[#allocation5 + $0x2c] sm:$0xf]
    %v79 = vld [vmem:[#allocation5 + $0x30] sm:$0xf]
    %v80 = vld [vmem:[#allocation5 + $0x34] sm:$0xf]
    %v81 = vld [vmem:[#allocation5 + $0x38] sm:$0xf]
    %v82 = vld [vmem:[#allocation5 + $0x3c] sm:$0xf]
    %v87 = vunpack.c.l.b16 %v63
    %v88 = vunpack.c.l.b16 %v64
    %v89 = vunpack.c.l.b16 %v65
    %v90 = vunpack.c.l.b16 %v66
    %v91 = vpack.c.b16 %v88, %v87
    %v92 = vpack.c.b16 %v90, %v89
    %v111 = vunpack.c.l.b16 %v67
    %v112 = vunpack.c.l.b16 %v68
    %v113 = vunpack.c.l.b16 %v69
    %v114 = vunpack.c.l.b16 %v70
    %v115 = vunpack.c.l.b16 %v71
    %v116 = vunpack.c.l.b16 %v72
    %v117 = vunpack.c.l.b16 %v73
    %v118 = vunpack.c.l.b16 %v74
    %v119 = vunpack.c.l.b16 %v75
    %v120 = vunpack.c.l.b16 %v76
    %v121 = vunpack.c.l.b16 %v77
    %v122 = vunpack.c.l.b16 %v78
    %v123 = vunpack.c.l.b16 %v79
    %v124 = vunpack.c.l.b16 %v80
    %v125 = vunpack.c.l.b16 %v81
    %v126 = vunpack.c.l.b16 %v82
    %v127 = vpack.c.b16 %v112, %v111
    %v128 = vpack.c.b16 %v114, %v113
    %v129 = vpack.c.b16 %v116, %v115
    %v130 = vpack.c.b16 %v118, %v117
    %v131 = vpack.c.b16 %v120, %v119
    %v132 = vpack.c.b16 %v122, %v121
    %v133 = vpack.c.b16 %v124, %v123
    %v134 = vpack.c.b16 %v126, %v125
    %143 = vmatprep.subr.bf16.mxu0 0
    %144 = vmatpush1.bf16.msra.mxu0 %v127
    %145 = vmatprep.subr.bf16.mxu0 0
    %146 = vmatpush1.bf16.msra.mxu0 %v128
    %147 = vmatprep.subr.bf16.mxu0 0
    %148 = vmatpush1.bf16.msra.mxu0 %v129
    %149 = vmatprep.subr.bf16.mxu0 0
    %150 = vmatpush1.bf16.msra.mxu0 %v130
    %151 = vmatprep.subr.bf16.mxu0 0
    %152 = vmatpush1.bf16.msra.mxu0 %v131
    %153 = vmatprep.subr.bf16.mxu0 0
    %154 = vmatpush1.bf16.msra.mxu0 %v132
    %155 = vmatprep.subr.bf16.mxu0 0
    %156 = vmatpush1.bf16.msra.mxu0 %v133
    %157 = vmatprep.subr.bf16.mxu0 0
    %158 = vmatpush1.bf16.msra.mxu0 %v134
    %159 = vmatprep.subr.bf16.mxu0 0
    %160 = vmatpush1.bf16.msra.mxu0 0
    %161 = vmatprep.subr.bf16.mxu0 0
    %162 = vmatpush1.bf16.msra.mxu0 0
    %163 = vmatprep.subr.bf16.mxu0 0
    %164 = vmatpush1.bf16.msra.mxu0 0
    %165 = vmatprep.subr.bf16.mxu0 0
    %166 = vmatpush1.bf16.msra.mxu0 0
    %167 = vmatprep.subr.bf16.mxu0 0
    %168 = vmatpush1.bf16.msra.mxu0 0
    %169 = vmatprep.subr.bf16.mxu0 0
    %170 = vmatpush1.bf16.msra.mxu0 0
    %171 = vmatprep.subr.bf16.mxu0 0
    %172 = vmatpush1.bf16.msra.mxu0 0
    %173 = vmatprep.subr.bf16.mxu0 0
    %174 = vmatpush1.bf16.msra.mxu0 0
    %175 = vmatprep.mubr.bf16.mxu0 0
    %176 = vmatmul.mubr.bf16.gmra.mrb[0].mxu0 %v91
    %v177 = vpop.f32.mrb[0].mxu0
    %v178 = vadd.f32 0.0, %v177
    %v179 = vpop.f32.mrb[0].mxu0
    %v180 = vpop.f32.mrb[0].mxu0
    %v181 = vadd.f32 0.0, %v180
    %v182 = vpop.f32.mrb[0].mxu0
    %183 = vmatprep.mubr.bf16.mxu0 0
    %184 = vmatmul.mubr.bf16.gmra.mrb[0].mxu0 %v92
    %v185 = vpop.f32.mrb[0].mxu0
    %v186 = vadd.f32 0.0, %v185
    %v187 = vpop.f32.mrb[0].mxu0
    %v188 = vpop.f32.mrb[0].mxu0
    %v189 = vadd.f32 0.0, %v188
    %v190 = vpop.f32.mrb[0].mxu0
    %191 = vdwg.mxu0
    %v192 = vrot.slane %v178, 7
    %v193 = vrot.slane %v181, 7
    %v194 = vrot.slane %v186, 7
    %v195 = vrot.slane %v189, 7
    %v196 = vlaneseq
    %v197 = vshrl.u32 %v196, 7
    %vm198 = vcmp.lt.s32.totalorder %v197, 1
    %v199 = vsel %vm198, %v194, %v195
    %v200 = vsel %vm198, %v193, %v194
    %v201 = vsel %vm198, %v192, %v193
    %v202 = vsel %vm198, %v195, %v192
    %203 = vrot.lane.b32.xlu0 %v178, 96
    %v204 = vpop.permute.xlu0 %203
    %205 = vrot.lane.b32.xlu0 %v181, 96
    %v206 = vpop.permute.xlu0 %205
    %207 = vrot.lane.b32.xlu0 %v186, 96
    %v208 = vpop.permute.xlu0 %207
    %209 = vrot.lane.b32.xlu0 %v189, 96
    %v210 = vpop.permute.xlu0 %209
    %v211 = vadd.f32 %v202, %v204
    %v212 = vadd.f32 %v201, %v206
    %v213 = vadd.f32 %v200, %v208
    %v214 = vadd.f32 %v199, %v210
    %v215 = vrot.slane %v178, 1
    %v216 = vrot.slane %v181, 1
    %v217 = vrot.slane %v186, 1
    %v218 = vrot.slane %v189, 1
    %vm219 = vcmp.lt.s32.totalorder %v197, 7
    %v220 = vsel %vm219, %v217, %v218
    %v221 = vsel %vm219, %v216, %v217
    %v222 = vsel %vm219, %v215, %v216
    %v223 = vsel %vm219, %v218, %v215
    %224 = vrot.lane.b32.xlu0 %v222, 64
    %v225 = vpop.permute.xlu0 %224
    %226 = vrot.lane.b32.xlu0 %v221, 64
    %v227 = vpop.permute.xlu0 %226
    %228 = vrot.lane.b32.xlu0 %v220, 64
    %v229 = vpop.permute.xlu0 %228
    %230 = vrot.lane.b32.xlu0 %v223, 64
    %v231 = vpop.permute.xlu0 %230
    %v232 = vadd.f32 %v211, %v225
    %v233 = vadd.f32 %v212, %v227
    %v234 = vadd.f32 %v213, %v229
    %v235 = vadd.f32 %v214, %v231
    %v236 = vld [vmem:[#allocation7] sm:$0x1]
    %v237 = vld [vmem:[#allocation7 + $0x1] sm:$0x1]
    %v238 = vld [vmem:[#allocation7 + $0x2] sm:$0x1]
    %v239 = vlaneseq
    %v240 = vshrl.u32 %v239, 7
    %v241 = vsub.s32 0, %v240
    %v242 = vrot.slane %v236, %v241
    %v243 = vadd.f32 %v232, %v242
    %v244 = vadd.f32 %v233, %v242
    %v245 = vadd.f32 %v234, %v242
    %v246 = vadd.f32 %v235, %v242
    %v247 = vmax.f32 %v243, 0.0
    %v248 = vmax.f32 %v244, 0.0
    %v249 = vmax.f32 %v245, 0.0
    %v250 = vmax.f32 %v246, 0.0
    %v251 = vpack.c.bf16 %v248, %v247
    %v252 = vpack.c.bf16 %v250, %v249
    %v253 = vld [vmem:[%s2] sm:$0x1]
    %vm254 = vcmask 261120
    %v256 = vsel %vm254, %v253, 0
    %258 = vmatprep.subr.bf16.mxu0 0
    %259 = vmatpush1.bf16.msra.mxu0 %v251
    %260 = vmatprep.subr.bf16.mxu0 0
    %261 = vmatpush1.bf16.msra.mxu0 %v252
    %262 = vmatprep.subr.bf16.mxu0 0
    %263 = vmatpush1.bf16.msra.mxu0 0
    %264 = vmatprep.subr.bf16.mxu0 0
    %265 = vmatpush1.bf16.msra.mxu0 0
    %266 = vmatprep.subr.bf16.mxu0 0
    %267 = vmatpush1.bf16.msra.mxu0 0
    %268 = vmatprep.subr.bf16.mxu0 0
    %269 = vmatpush1.bf16.msra.mxu0 0
    %270 = vmatprep.subr.bf16.mxu0 0
    %271 = vmatpush1.bf16.msra.mxu0 0
    %272 = vmatprep.subr.bf16.mxu0 0
    %273 = vmatpush1.bf16.msra.mxu0 0
    %274 = vmatprep.subr.bf16.mxu0 0
    %275 = vmatpush1.bf16.msra.mxu0 0
    %276 = vmatprep.subr.bf16.mxu0 0
    %277 = vmatpush1.bf16.msra.mxu0 0
    %278 = vmatprep.subr.bf16.mxu0 0
    %279 = vmatpush1.bf16.msra.mxu0 0
    %280 = vmatprep.subr.bf16.mxu0 0
    %281 = vmatpush1.bf16.msra.mxu0 0
    %282 = vmatprep.subr.bf16.mxu0 0
    %283 = vmatpush1.bf16.msra.mxu0 0
    %284 = vmatprep.subr.bf16.mxu0 0
    %285 = vmatpush1.bf16.msra.mxu0 0
    %286 = vmatprep.subr.bf16.mxu0 0
    %287 = vmatpush1.bf16.msra.mxu0 0
    %288 = vmatprep.subr.bf16.mxu0 0
    %289 = vmatpush1.bf16.msra.mxu0 0
    %290 = vmatprep.mubr.bf16.mxu0 0
    %291 = vmatmul.mubr.bf16.gmra.mrb[0].mxu0 %v256
    %v292 = vpop.f32.mrb[0].mxu0
    %v293 = vadd.f32 0.0, %v292
    %v294 = vpop.f32.mrb[0].mxu0
    %v295 = vpop.f32.mrb[0].mxu0
    %v296 = vpop.f32.mrb[0].mxu0
    %297 = vdwg.mxu0
    %v298 = vmul.bf16 %v251, %v251
    %v299 = vmul.bf16 %v252, %v252
    %300 = vmatprep.subr.bf16.mxu0 0
    %301 = vmatpush1.bf16.msra.mxu0 %v298
    %302 = vmatprep.subr.bf16.mxu0 0
    %303 = vmatpush1.bf16.msra.mxu0 %v299
    %304 = vmatprep.subr.bf16.mxu0 0
    %305 = vmatpush1.bf16.msra.mxu0 0
    %306 = vmatprep.subr.bf16.mxu0 0
    %307 = vmatpush1.bf16.msra.mxu0 0
    %308 = vmatprep.subr.bf16.mxu0 0
    %309 = vmatpush1.bf16.msra.mxu0 0
    %310 = vmatprep.subr.bf16.mxu0 0
    %311 = vmatpush1.bf16.msra.mxu0 0
    %312 = vmatprep.subr.bf16.mxu0 0
    %313 = vmatpush1.bf16.msra.mxu0 0
    %314 = vmatprep.subr.bf16.mxu0 0
    %315 = vmatpush1.bf16.msra.mxu0 0
    %316 = vmatprep.subr.bf16.mxu0 0
    %317 = vmatpush1.bf16.msra.mxu0 0
    %318 = vmatprep.subr.bf16.mxu0 0
    %319 = vmatpush1.bf16.msra.mxu0 0
    %320 = vmatprep.subr.bf16.mxu0 0
    %321 = vmatpush1.bf16.msra.mxu0 0
    %322 = vmatprep.subr.bf16.mxu0 0
    %323 = vmatpush1.bf16.msra.mxu0 0
    %324 = vmatprep.subr.bf16.mxu0 0
    %325 = vmatpush1.bf16.msra.mxu0 0
    %326 = vmatprep.subr.bf16.mxu0 0
    %327 = vmatpush1.bf16.msra.mxu0 0
    %328 = vmatprep.subr.bf16.mxu0 0
    %329 = vmatpush1.bf16.msra.mxu0 0
    %330 = vmatprep.subr.bf16.mxu0 0
    %331 = vmatpush1.bf16.msra.mxu0 0
    %332 = vmatprep.mubr.bf16.mxu0 0
    %333 = vmatmul.mubr.bf16.gmra.mrb[0].mxu0 %v256
    %v334 = vpop.f32.mrb[0].mxu0
    %v335 = vadd.f32 0.0, %v334
    %v336 = vpop.f32.mrb[0].mxu0
    %v337 = vpop.f32.mrb[0].mxu0
    %v338 = vpop.f32.mrb[0].mxu0
    %339 = vdwg.mxu0
    %v340 = vmul.f32 %v293, 0.035714287
    %v341 = vmul.f32 %v335, 0.035714287
    %v342 = vmul.f32 %v340, %v340
    %v343 = vsub.f32 %v341, %v342
    %v344 = vmax.f32 %v343, 0.0
    %v345 = vadd.f32 %v344, 1e-05
    %v346 = vrsqrt.pop %v345
    %v347 = vmul.f32 %v346, %v237
    %v348 = vmul.f32 %v340, %v347
    %v349 = vsub.f32 %v238, %v348
    %v350 = vunpack.c.l.bf16 %v251
    %v351 = vunpack.c.h.bf16 %v251
    %v352 = vunpack.c.l.bf16 %v252
    %v353 = vunpack.c.h.bf16 %v252
    %v354 = vlaneseq
    %v355 = vshrl.u32 %v354, 7
    %v356 = vsub.s32 0, %v355
    %v357 = vrot.slane %v347, %v356
    %v358 = vmul.f32 %v350, %v357
    %v359 = vmul.f32 %v351, %v357
    %v360 = vmul.f32 %v352, %v357
    %v361 = vmul.f32 %v353, %v357
    %v362 = vlaneseq
    %v363 = vshrl.u32 %v362, 7
    %v364 = vsub.s32 0, %v363
    %v365 = vrot.slane %v349, %v364
    %v366 = vadd.f32 %v358, %v365
    %v367 = vadd.f32 %v359, %v365
    %v368 = vadd.f32 %v360, %v365
    %v369 = vadd.f32 %v361, %v365
    %v370 = vpack.c.bf16 %v367, %v366
    %v371 = vpack.c.bf16 %v369, %v368
    %s372 = scalar_lea.vmem [#allocation5], 64
    %v373 = vld [vmem:[%s372] sm:$0xf]
    %v374 = vld [vmem:[%s372 + $0x4] sm:$0xf]
    %v375 = vld [vmem:[%s372 + $0x8] sm:$0xf]
    %v376 = vld [vmem:[%s372 + $0xc] sm:$0xf]
    %v377 = vld [vmem:[%s372 + $0x10] sm:$0xf]
    %v378 = vld [vmem:[%s372 + $0x14] sm:$0xf]
    %v379 = vld [vmem:[%s372 + $0x18] sm:$0xf]
    %v380 = vld [vmem:[%s372 + $0x1c] sm:$0xf]
    %v381 = vld [vmem:[%s372 + $0x20] sm:$0xf]
    %v382 = vld [vmem:[%s372 + $0x24] sm:$0xf]
    %v383 = vld [vmem:[%s372 + $0x28] sm:$0xf]
    %v384 = vld [vmem:[%s372 + $0x2c] sm:$0xf]
    %v385 = vld [vmem:[%s372 + $0x30] sm:$0xf]
    %v386 = vld [vmem:[%s372 + $0x34] sm:$0xf]
    %v387 = vld [vmem:[%s372 + $0x38] sm:$0xf]
    %v388 = vld [vmem:[%s372 + $0x3c] sm:$0xf]
    %v405 = vunpack.c.l.b16 %v373
    %v406 = vunpack.c.l.b16 %v374
    %v407 = vunpack.c.l.b16 %v375
    %v408 = vunpack.c.l.b16 %v376
    %v409 = vunpack.c.l.b16 %v377
    %v410 = vunpack.c.l.b16 %v378
    %v411 = vunpack.c.l.b16 %v379
    %v412 = vunpack.c.l.b16 %v380
    %v413 = vunpack.c.l.b16 %v381
    %v414 = vunpack.c.l.b16 %v382
    %v415 = vunpack.c.l.b16 %v383
    %v416 = vunpack.c.l.b16 %v384
    %v417 = vunpack.c.l.b16 %v385
    %v418 = vunpack.c.l.b16 %v386
    %v419 = vunpack.c.l.b16 %v387
    %v420 = vunpack.c.l.b16 %v388
    %v421 = vpack.c.b16 %v406, %v405
    %v422 = vpack.c.b16 %v408, %v407
    %v423 = vpack.c.b16 %v410, %v409
    %v424 = vpack.c.b16 %v412, %v411
    %v425 = vpack.c.b16 %v414, %v413
    %v426 = vpack.c.b16 %v416, %v415
    %v427 = vpack.c.b16 %v418, %v417
    %v428 = vpack.c.b16 %v420, %v419
    %437 = vmatprep.subr.bf16.mxu0 0
    %438 = vmatpush1.bf16.msra.mxu0 %v421
    %439 = vmatprep.subr.bf16.mxu0 0
    %440 = vmatpush1.bf16.msra.mxu0 %v422
    %441 = vmatprep.subr.bf16.mxu0 0
    %442 = vmatpush1.bf16.msra.mxu0 %v423
    %443 = vmatprep.subr.bf16.mxu0 0
    %444 = vmatpush1.bf16.msra.mxu0 %v424
    %445 = vmatprep.subr.bf16.mxu0 0
    %446 = vmatpush1.bf16.msra.mxu0 %v425
    %447 = vmatprep.subr.bf16.mxu0 0
    %448 = vmatpush1.bf16.msra.mxu0 %v426
    %449 = vmatprep.subr.bf16.mxu0 0
    %450 = vmatpush1.bf16.msra.mxu0 %v427
    %451 = vmatprep.subr.bf16.mxu0 0
    %452 = vmatpush1.bf16.msra.mxu0 %v428
    %453 = vmatprep.subr.bf16.mxu0 0
    %454 = vmatpush1.bf16.msra.mxu0 0
    %455 = vmatprep.subr.bf16.mxu0 0
    %456 = vmatpush1.bf16.msra.mxu0 0
    %457 = vmatprep.subr.bf16.mxu0 0
    %458 = vmatpush1.bf16.msra.mxu0 0
    %459 = vmatprep.subr.bf16.mxu0 0
    %460 = vmatpush1.bf16.msra.mxu0 0
    %461 = vmatprep.subr.bf16.mxu0 0
    %462 = vmatpush1.bf16.msra.mxu0 0
    %463 = vmatprep.subr.bf16.mxu0 0
    %464 = vmatpush1.bf16.msra.mxu0 0
    %465 = vmatprep.subr.bf16.mxu0 0
    %466 = vmatpush1.bf16.msra.mxu0 0
    %467 = vmatprep.subr.bf16.mxu0 0
    %468 = vmatpush1.bf16.msra.mxu0 0
    %469 = vmatprep.mubr.bf16.mxu0 0
    %470 = vmatmul.mubr.bf16.gmra.mrb[0].mxu0 %v370
    %v471 = vpop.f32.mrb[0].mxu0
    %v472 = vadd.f32 0.0, %v471
    %v473 = vpop.f32.mrb[0].mxu0
    %v474 = vpop.f32.mrb[0].mxu0
    %v475 = vadd.f32 0.0, %v474
    %v476 = vpop.f32.mrb[0].mxu0
    %477 = vmatprep.mubr.bf16.mxu0 0
    %478 = vmatmul.mubr.bf16.gmra.mrb[0].mxu0 %v371
    %v479 = vpop.f32.mrb[0].mxu0
    %v480 = vadd.f32 0.0, %v479
    %v481 = vpop.f32.mrb[0].mxu0
    %v482 = vpop.f32.mrb[0].mxu0
    %v483 = vadd.f32 0.0, %v482
    %v484 = vpop.f32.mrb[0].mxu0
    %485 = vdwg.mxu0
    %v486 = vrot.slane %v472, 7
    %v487 = vrot.slane %v475, 7
    %v488 = vrot.slane %v480, 7
    %v489 = vrot.slane %v483, 7
    %v490 = vsel %vm198, %v488, %v489
    %v491 = vsel %vm198, %v487, %v488
    %v492 = vsel %vm198, %v486, %v487
    %v493 = vsel %vm198, %v489, %v486
    %494 = vrot.lane.b32.xlu0 %v472, 96
    %v495 = vpop.permute.xlu0 %494
    %496 = vrot.lane.b32.xlu0 %v475, 96
    %v497 = vpop.permute.xlu0 %496
    %498 = vrot.lane.b32.xlu0 %v480, 96
    %v499 = vpop.permute.xlu0 %498
    %500 = vrot.lane.b32.xlu0 %v483, 96
    %v501 = vpop.permute.xlu0 %500
    %v502 = vadd.f32 %v493, %v495
    %v503 = vadd.f32 %v492, %v497
    %v504 = vadd.f32 %v491, %v499
    %v505 = vadd.f32 %v490, %v501
    %v506 = vrot.slane %v472, 1
    %v507 = vrot.slane %v475, 1
    %v508 = vrot.slane %v480, 1
    %v509 = vrot.slane %v483, 1
    %v510 = vsel %vm219, %v508, %v509
    %v511 = vsel %vm219, %v507, %v508
    %v512 = vsel %vm219, %v506, %v507
    %v513 = vsel %vm219, %v509, %v506
    %514 = vrot.lane.b32.xlu0 %v512, 64
    %v515 = vpop.permute.xlu0 %514
    %516 = vrot.lane.b32.xlu0 %v511, 64
    %v517 = vpop.permute.xlu0 %516
    %518 = vrot.lane.b32.xlu0 %v510, 64
    %v519 = vpop.permute.xlu0 %518
    %520 = vrot.lane.b32.xlu0 %v513, 64
    %v521 = vpop.permute.xlu0 %520
    %v522 = vadd.f32 %v502, %v515
    %v523 = vadd.f32 %v503, %v517
    %v524 = vadd.f32 %v504, %v519
    %v525 = vadd.f32 %v505, %v521
    %v526 = vld [vmem:[#allocation7 + $0x3] sm:$0x1]
    %v527 = vld [vmem:[#allocation7 + $0x4] sm:$0x1]
    %v528 = vld [vmem:[#allocation7 + $0x5] sm:$0x1]
    %v529 = vlaneseq
    %v530 = vshrl.u32 %v529, 7
    %v531 = vsub.s32 0, %v530
    %v532 = vrot.slane %v526, %v531
    %v533 = vadd.f32 %v522, %v532
    %v534 = vadd.f32 %v523, %v532
    %v535 = vadd.f32 %v524, %v532
    %v536 = vadd.f32 %v525, %v532
    %v537 = vmax.f32 %v533, 0.0
    %v538 = vmax.f32 %v534, 0.0
    %v539 = vmax.f32 %v535, 0.0
    %v540 = vmax.f32 %v536, 0.0
    %v541 = vpack.c.bf16 %v538, %v537
    %v542 = vpack.c.bf16 %v540, %v539
    %v544 = vunpack.c.l.b16 %v253
    %v545 = vpack.c.b16 %v544, %v544
    %v547 = vshrl.u32 %v545, 16
    %v550 = vsel %vm254, %v547, 0
    %552 = vmatprep.subr.bf16.mxu0 0
    %553 = vmatpush1.bf16.msra.mxu0 %v541
    %554 = vmatprep.subr.bf16.mxu0 0
    %555 = vmatpush1.bf16.msra.mxu0 %v542
    %556 = vmatprep.subr.bf16.mxu0 0
    %557 = vmatpush1.bf16.msra.mxu0 0
    %558 = vmatprep.subr.bf16.mxu0 0
    %559 = vmatpush1.bf16.msra.mxu0 0
    %560 = vmatprep.subr.bf16.mxu0 0
    %561 = vmatpush1.bf16.msra.mxu0 0
    %562 = vmatprep.subr.bf16.mxu0 0
    %563 = vmatpush1.bf16.msra.mxu0 0
    %564 = vmatprep.subr.bf16.mxu0 0
    %565 = vmatpush1.bf16.msra.mxu0 0
    %566 = vmatprep.subr.bf16.mxu0 0
    %567 = vmatpush1.bf16.msra.mxu0 0
    %568 = vmatprep.subr.bf16.mxu0 0
    %569 = vmatpush1.bf16.msra.mxu0 0
    %570 = vmatprep.subr.bf16.mxu0 0
    %571 = vmatpush1.bf16.msra.mxu0 0
    %572 = vmatprep.subr.bf16.mxu0 0
    %573 = vmatpush1.bf16.msra.mxu0 0
    %574 = vmatprep.subr.bf16.mxu0 0
    %575 = vmatpush1.bf16.msra.mxu0 0
    %576 = vmatprep.subr.bf16.mxu0 0
    %577 = vmatpush1.bf16.msra.mxu0 0
    %578 = vmatprep.subr.bf16.mxu0 0
    %579 = vmatpush1.bf16.msra.mxu0 0
    %580 = vmatprep.subr.bf16.mxu0 0
    %581 = vmatpush1.bf16.msra.mxu0 0
    %582 = vmatprep.subr.bf16.mxu0 0
    %583 = vmatpush1.bf16.msra.mxu0 0
    %584 = vmatprep.mubr.bf16.mxu0 0
    %585 = vmatmul.mubr.bf16.gmra.mrb[0].mxu0 %v550
    %v586 = vpop.f32.mrb[0].mxu0
    %v587 = vadd.f32 0.0, %v586
    %v588 = vpop.f32.mrb[0].mxu0
    %v589 = vpop.f32.mrb[0].mxu0
    %v590 = vpop.f32.mrb[0].mxu0
    %591 = vdwg.mxu0
    %v592 = vmul.bf16 %v541, %v541
    %v593 = vmul.bf16 %v542, %v542
    %594 = vmatprep.subr.bf16.mxu0 0
    %595 = vmatpush1.bf16.msra.mxu0 %v592
    %596 = vmatprep.subr.bf16.mxu0 0
    %597 = vmatpush1.bf16.msra.mxu0 %v593
    %598 = vmatprep.subr.bf16.mxu0 0
    %599 = vmatpush1.bf16.msra.mxu0 0
    %600 = vmatprep.subr.bf16.mxu0 0
    %601 = vmatpush1.bf16.msra.mxu0 0
    %602 = vmatprep.subr.bf16.mxu0 0
    %603 = vmatpush1.bf16.msra.mxu0 0
    %604 = vmatprep.subr.bf16.mxu0 0
    %605 = vmatpush1.bf16.msra.mxu0 0
    %606 = vmatprep.subr.bf16.mxu0 0
    %607 = vmatpush1.bf16.msra.mxu0 0
    %608 = vmatprep.subr.bf16.mxu0 0
    %609 = vmatpush1.bf16.msra.mxu0 0
    %610 = vmatprep.subr.bf16.mxu0 0
    %611 = vmatpush1.bf16.msra.mxu0 0
    %612 = vmatprep.subr.bf16.mxu0 0
    %613 = vmatpush1.bf16.msra.mxu0 0
    %614 = vmatprep.subr.bf16.mxu0 0
    %615 = vmatpush1.bf16.msra.mxu0 0
    %616 = vmatprep.subr.bf16.mxu0 0
    %617 = vmatpush1.bf16.msra.mxu0 0
    %618 = vmatprep.subr.bf16.mxu0 0
    %619 = vmatpush1.bf16.msra.mxu0 0
    %620 = vmatprep.subr.bf16.mxu0 0
    %621 = vmatpush1.bf16.msra.mxu0 0
    %622 = vmatprep.subr.bf16.mxu0 0
    %623 = vmatpush1.bf16.msra.mxu0 0
    %624 = vmatprep.subr.bf16.mxu0 0
    %625 = vmatpush1.bf16.msra.mxu0 0
    %626 = vmatprep.mubr.bf16.mxu0 0
    %627 = vmatmul.mubr.bf16.gmra.mrb[0].mxu0 %v550
    %v628 = vpop.f32.mrb[0].mxu0
    %v629 = vadd.f32 0.0, %v628
    %v630 = vpop.f32.mrb[0].mxu0
    %v631 = vpop.f32.mrb[0].mxu0
    %v632 = vpop.f32.mrb[0].mxu0
    %633 = vdwg.mxu0
    %v634 = vmul.f32 %v587, 0.041666668
    %v635 = vmul.f32 %v629, 0.041666668
    %v636 = vmul.f32 %v634, %v634
    %v637 = vsub.f32 %v635, %v636
    %v638 = vmax.f32 %v637, 0.0
    %v639 = vadd.f32 %v638, 1e-05
    %v640 = vrsqrt.pop %v639
    %v641 = vmul.f32 %v640, %v527
    %v642 = vmul.f32 %v634, %v641
    %v643 = vsub.f32 %v528, %v642
    %v644 = vunpack.c.l.bf16 %v541
    %v645 = vunpack.c.h.bf16 %v541
    %v646 = vunpack.c.l.bf16 %v542
    %v647 = vunpack.c.h.bf16 %v542
    %v648 = vlaneseq
    %v649 = vshrl.u32 %v648, 7
    %v650 = vsub.s32 0, %v649
    %v651 = vrot.slane %v641, %v650
    %v652 = vmul.f32 %v644, %v651
    %v653 = vmul.f32 %v645, %v651
    %v654 = vmul.f32 %v646, %v651
    %v655 = vmul.f32 %v647, %v651
    %v656 = vlaneseq
    %v657 = vshrl.u32 %v656, 7
    %v658 = vsub.s32 0, %v657
    %v659 = vrot.slane %v643, %v658
    %v660 = vadd.f32 %v652, %v659
    %v661 = vadd.f32 %v653, %v659
    %v662 = vadd.f32 %v654, %v659
    %v663 = vadd.f32 %v655, %v659
    %v664 = vpack.c.bf16 %v661, %v660
    %v665 = vpack.c.bf16 %v663, %v662
    %s666 = scalar_lea.vmem [#allocation5], 128
    %v667 = vld [vmem:[%s666] sm:$0xf]
    %v668 = vld [vmem:[%s666 + $0x4] sm:$0xf]
    %v669 = vld [vmem:[%s666 + $0x8] sm:$0xf]
    %v670 = vld [vmem:[%s666 + $0xc] sm:$0xf]
    %v671 = vld [vmem:[%s666 + $0x10] sm:$0xf]
    %v672 = vld [vmem:[%s666 + $0x14] sm:$0xf]
    %v673 = vld [vmem:[%s666 + $0x18] sm:$0xf]
    %v674 = vld [vmem:[%s666 + $0x1c] sm:$0xf]
    %v675 = vld [vmem:[%s666 + $0x20] sm:$0xf]
    %v676 = vld [vmem:[%s666 + $0x24] sm:$0xf]
    %v677 = vld [vmem:[%s666 + $0x28] sm:$0xf]
    %v678 = vld [vmem:[%s666 + $0x2c] sm:$0xf]
    %v679 = vld [vmem:[%s666 + $0x30] sm:$0xf]
    %v680 = vld [vmem:[%s666 + $0x34] sm:$0xf]
    %v681 = vld [vmem:[%s666 + $0x38] sm:$0xf]
    %v682 = vld [vmem:[%s666 + $0x3c] sm:$0xf]
    %v683 = vld [vmem:[#allocation7 + $0x6] sm:$0x1]
    %v684 = vld [vmem:[#allocation7 + $0x7] sm:$0x1]
    %v685 = vld [vmem:[#allocation7 + $0x8] sm:$0x1]
    %v686 = vlaneseq
    %v687 = vshrl.u32 %v686, 7
    %v688 = vsub.s32 0, %v687
    %v689 = vrot.slane %v683, %v688
    %v706 = vunpack.c.l.b16 %v667
    %v707 = vunpack.c.l.b16 %v668
    %v708 = vunpack.c.l.b16 %v669
    %v709 = vunpack.c.l.b16 %v670
    %v710 = vunpack.c.l.b16 %v671
    %v711 = vunpack.c.l.b16 %v672
    %v712 = vunpack.c.l.b16 %v673
    %v713 = vunpack.c.l.b16 %v674
    %v714 = vunpack.c.l.b16 %v675
    %v715 = vunpack.c.l.b16 %v676
    %v716 = vunpack.c.l.b16 %v677
    %v717 = vunpack.c.l.b16 %v678
    %v718 = vunpack.c.l.b16 %v679
    %v719 = vunpack.c.l.b16 %v680
    %v720 = vunpack.c.l.b16 %v681
    %v721 = vunpack.c.l.b16 %v682
    %v722 = vpack.c.b16 %v707, %v706
    %v723 = vpack.c.b16 %v709, %v708
    %v724 = vpack.c.b16 %v711, %v710
    %v725 = vpack.c.b16 %v713, %v712
    %v726 = vpack.c.b16 %v715, %v714
    %v727 = vpack.c.b16 %v717, %v716
    %v728 = vpack.c.b16 %v719, %v718
    %v729 = vpack.c.b16 %v721, %v720
    %738 = vmatprep.subr.bf16.mxu0 0
    %739 = vmatpush1.bf16.msra.mxu0 %v722
    %740 = vmatprep.subr.bf16.mxu0 0
    %741 = vmatpush1.bf16.msra.mxu0 %v723
    %742 = vmatprep.subr.bf16.mxu0 0
    %743 = vmatpush1.bf16.msra.mxu0 %v724
    %744 = vmatprep.subr.bf16.mxu0 0
    %745 = vmatpush1.bf16.msra.mxu0 %v725
    %746 = vmatprep.subr.bf16.mxu0 0
    %747 = vmatpush1.bf16.msra.mxu0 %v726
    %748 = vmatprep.subr.bf16.mxu0 0
    %749 = vmatpush1.bf16.msra.mxu0 %v727
    %750 = vmatprep.subr.bf16.mxu0 0
    %751 = vmatpush1.bf16.msra.mxu0 %v728
    %752 = vmatprep.subr.bf16.mxu0 0
    %753 = vmatpush1.bf16.msra.mxu0 %v729
    %754 = vmatprep.subr.bf16.mxu0 0
    %755 = vmatpush1.bf16.msra.mxu0 0
    %756 = vmatprep.subr.bf16.mxu0 0
    %757 = vmatpush1.bf16.msra.mxu0 0
    %758 = vmatprep.subr.bf16.mxu0 0
    %759 = vmatpush1.bf16.msra.mxu0 0
    %760 = vmatprep.subr.bf16.mxu0 0
    %761 = vmatpush1.bf16.msra.mxu0 0
    %762 = vmatprep.subr.bf16.mxu0 0
    %763 = vmatpush1.bf16.msra.mxu0 0
    %764 = vmatprep.subr.bf16.mxu0 0
    %765 = vmatpush1.bf16.msra.mxu0 0
    %766 = vmatprep.subr.bf16.mxu0 0
    %767 = vmatpush1.bf16.msra.mxu0 0
    %768 = vmatprep.subr.bf16.mxu0 0
    %769 = vmatpush1.bf16.msra.mxu0 0
    %770 = vmatprep.mubr.bf16.mxu0 0
    %771 = vmatmul.mubr.bf16.gmra.mrb[0].mxu0 %v664
    %v772 = vpop.f32.mrb[0].mxu0
    %v773 = vadd.f32 %v689, %v772
    %v774 = vpop.f32.mrb[0].mxu0
    %v775 = vpop.f32.mrb[0].mxu0
    %v776 = vadd.f32 %v689, %v775
    %v777 = vpop.f32.mrb[0].mxu0
    %778 = vmatprep.mubr.bf16.mxu0 0
    %779 = vmatmul.mubr.bf16.gmra.mrb[0].mxu0 %v665
    %v780 = vpop.f32.mrb[0].mxu0
    %v781 = vadd.f32 %v689, %v780
    %v782 = vpop.f32.mrb[0].mxu0
    %v783 = vpop.f32.mrb[0].mxu0
    %v784 = vadd.f32 %v689, %v783
    %v785 = vpop.f32.mrb[0].mxu0
    %786 = vdwg.mxu0
    %v787 = vmax.f32 %v773, 0.0
    %v788 = vmax.f32 %v776, 0.0
    %v789 = vmax.f32 %v781, 0.0
    %v790 = vmax.f32 %v784, 0.0
    %v791 = vpack.c.bf16 %v788, %v787
    %v792 = vpack.c.bf16 %v790, %v789
    %v793 = vld [vmem:[%s2] sm:$0x2]
    %v795 = vunpack.c.l.b16 %v793
    %v796 = vpack.c.b16 %v795, %v795
    %v797 = vrot.slane %v796, 1
    %v799 = vsel %vm254, %v797, 0
    %801 = vmatprep.subr.bf16.mxu0 0
    %802 = vmatpush1.bf16.msra.mxu0 %v791
    %803 = vmatprep.subr.bf16.mxu0 0
    %804 = vmatpush1.bf16.msra.mxu0 %v792
    %805 = vmatprep.subr.bf16.mxu0 0
    %806 = vmatpush1.bf16.msra.mxu0 0
    %807 = vmatprep.subr.bf16.mxu0 0
    %808 = vmatpush1.bf16.msra.mxu0 0
    %809 = vmatprep.subr.bf16.mxu0 0
    %810 = vmatpush1.bf16.msra.mxu0 0
    %811 = vmatprep.subr.bf16.mxu0 0
    %812 = vmatpush1.bf16.msra.mxu0 0
    %813 = vmatprep.subr.bf16.mxu0 0
    %814 = vmatpush1.bf16.msra.mxu0 0
    %815 = vmatprep.subr.bf16.mxu0 0
    %816 = vmatpush1.bf16.msra.mxu0 0
    %817 = vmatprep.subr.bf16.mxu0 0
    %818 = vmatpush1.bf16.msra.mxu0 0
    %819 = vmatprep.subr.bf16.mxu0 0
    %820 = vmatpush1.bf16.msra.mxu0 0
    %821 = vmatprep.subr.bf16.mxu0 0
    %822 = vmatpush1.bf16.msra.mxu0 0
    %823 = vmatprep.subr.bf16.mxu0 0
    %824 = vmatpush1.bf16.msra.mxu0 0
    %825 = vmatprep.subr.bf16.mxu0 0
    %826 = vmatpush1.bf16.msra.mxu0 0
    %827 = vmatprep.subr.bf16.mxu0 0
    %828 = vmatpush1.bf16.msra.mxu0 0
    %829 = vmatprep.subr.bf16.mxu0 0
    %830 = vmatpush1.bf16.msra.mxu0 0
    %831 = vmatprep.subr.bf16.mxu0 0
    %832 = vmatpush1.bf16.msra.mxu0 0
    %833 = vmatprep.mubr.bf16.mxu0 0
    %834 = vmatmul.mubr.bf16.gmra.mrb[0].mxu0 %v799
    %v835 = vpop.f32.mrb[0].mxu0
    %v836 = vadd.f32 0.0, %v835
    %v837 = vpop.f32.mrb[0].mxu0
    %v838 = vpop.f32.mrb[0].mxu0
    %v839 = vpop.f32.mrb[0].mxu0
    %840 = vdwg.mxu0
    %v841 = vmul.bf16 %v791, %v791
    %v842 = vmul.bf16 %v792, %v792
    %843 = vmatprep.subr.bf16.mxu0 0
    %844 = vmatpush1.bf16.msra.mxu0 %v841
    %845 = vmatprep.subr.bf16.mxu0 0
    %846 = vmatpush1.bf16.msra.mxu0 %v842
    %847 = vmatprep.subr.bf16.mxu0 0
    %848 = vmatpush1.bf16.msra.mxu0 0
    %849 = vmatprep.subr.bf16.mxu0 0
    %850 = vmatpush1.bf16.msra.mxu0 0
    %851 = vmatprep.subr.bf16.mxu0 0
    %852 = vmatpush1.bf16.msra.mxu0 0
    %853 = vmatprep.subr.bf16.mxu0 0
    %854 = vmatpush1.bf16.msra.mxu0 0
    %855 = vmatprep.subr.bf16.mxu0 0
    %856 = vmatpush1.bf16.msra.mxu0 0
    %857 = vmatprep.subr.bf16.mxu0 0
    %858 = vmatpush1.bf16.msra.mxu0 0
    %859 = vmatprep.subr.bf16.mxu0 0
    %860 = vmatpush1.bf16.msra.mxu0 0
    %861 = vmatprep.subr.bf16.mxu0 0
    %862 = vmatpush1.bf16.msra.mxu0 0
    %863 = vmatprep.subr.bf16.mxu0 0
    %864 = vmatpush1.bf16.msra.mxu0 0
    %865 = vmatprep.subr.bf16.mxu0 0
    %866 = vmatpush1.bf16.msra.mxu0 0
    %867 = vmatprep.subr.bf16.mxu0 0
    %868 = vmatpush1.bf16.msra.mxu0 0
    %869 = vmatprep.subr.bf16.mxu0 0
    %870 = vmatpush1.bf16.msra.mxu0 0
    %871 = vmatprep.subr.bf16.mxu0 0
    %872 = vmatpush1.bf16.msra.mxu0 0
    %873 = vmatprep.subr.bf16.mxu0 0
    %874 = vmatpush1.bf16.msra.mxu0 0
    %875 = vmatprep.mubr.bf16.mxu0 0
    %876 = vmatmul.mubr.bf16.gmra.mrb[0].mxu0 %v799
    %v877 = vpop.f32.mrb[0].mxu0
    %v878 = vadd.f32 0.0, %v877
    %v879 = vpop.f32.mrb[0].mxu0
    %v880 = vpop.f32.mrb[0].mxu0
    %v881 = vpop.f32.mrb[0].mxu0
    %882 = vdwg.mxu0
    %v883 = vmul.f32 %v836, 0.041666668
    %v884 = vmul.f32 %v878, 0.041666668
    %v885 = vmul.f32 %v883, %v883
    %v886 = vsub.f32 %v884, %v885
    %v887 = vmax.f32 %v886, 0.0
    %v888 = vadd.f32 %v887, 1e-05
    %v889 = vrsqrt.pop %v888
    %v890 = vmul.f32 %v889, %v684
    %v891 = vmul.f32 %v883, %v890
    %v892 = vsub.f32 %v685, %v891
    %v893 = vunpack.c.l.bf16 %v791
    %v894 = vunpack.c.h.bf16 %v791
    %v895 = vunpack.c.l.bf16 %v792
    %v896 = vunpack.c.h.bf16 %v792
    %v897 = vlaneseq
    %v898 = vshrl.u32 %v897, 7
    %v899 = vsub.s32 0, %v898
    %v900 = vrot.slane %v890, %v899
    %v901 = vmul.f32 %v893, %v900
    %v902 = vmul.f32 %v894, %v900
    %v903 = vmul.f32 %v895, %v900
    %v904 = vmul.f32 %v896, %v900
    %v905 = vlaneseq
    %v906 = vshrl.u32 %v905, 7
    %v907 = vsub.s32 0, %v906
    %v908 = vrot.slane %v892, %v907
    %v909 = vadd.f32 %v901, %v908
    %v910 = vadd.f32 %v902, %v908
    %v911 = vadd.f32 %v903, %v908
    %v912 = vadd.f32 %v904, %v908
    %v913 = vpack.c.bf16 %v910, %v909
    %v914 = vpack.c.bf16 %v912, %v911
    %s915 = scalar_lea.vmem [#allocation5], 192
    %v916 = vld [vmem:[%s915] sm:$0xf]
    %v917 = vld [vmem:[%s915 + $0x4] sm:$0xf]
    %v918 = vld [vmem:[%s915 + $0x8] sm:$0xf]
    %v919 = vld [vmem:[%s915 + $0xc] sm:$0xf]
    %v920 = vld [vmem:[%s915 + $0x10] sm:$0xf]
    %v921 = vld [vmem:[%s915 + $0x14] sm:$0xf]
    %v922 = vld [vmem:[%s915 + $0x18] sm:$0xf]
    %v923 = vld [vmem:[%s915 + $0x1c] sm:$0xf]
    %v924 = vld [vmem:[%s915 + $0x20] sm:$0xf]
    %v925 = vld [vmem:[%s915 + $0x24] sm:$0xf]
    %v926 = vld [vmem:[%s915 + $0x28] sm:$0xf]
    %v927 = vld [vmem:[%s915 + $0x2c] sm:$0xf]
    %v928 = vld [vmem:[%s915 + $0x30] sm:$0xf]
    %v929 = vld [vmem:[%s915 + $0x34] sm:$0xf]
    %v930 = vld [vmem:[%s915 + $0x38] sm:$0xf]
    %v931 = vld [vmem:[%s915 + $0x3c] sm:$0xf]
    %v932 = vld [vmem:[#allocation7 + $0x9] sm:$0x1]
    %v933 = vld [vmem:[#allocation7 + $0xa] sm:$0x1]
    %v934 = vld [vmem:[#allocation7 + $0xb] sm:$0x1]
    %v935 = vlaneseq
    %v936 = vshrl.u32 %v935, 7
    %v937 = vsub.s32 0, %v936
    %v938 = vrot.slane %v932, %v937
    %v955 = vunpack.c.l.b16 %v916
    %v956 = vunpack.c.l.b16 %v917
    %v957 = vunpack.c.l.b16 %v918
    %v958 = vunpack.c.l.b16 %v919
    %v959 = vunpack.c.l.b16 %v920
    %v960 = vunpack.c.l.b16 %v921
    %v961 = vunpack.c.l.b16 %v922
    %v962 = vunpack.c.l.b16 %v923
    %v963 = vunpack.c.l.b16 %v924
    %v964 = vunpack.c.l.b16 %v925
    %v965 = vunpack.c.l.b16 %v926
    %v966 = vunpack.c.l.b16 %v927
    %v967 = vunpack.c.l.b16 %v928
    %v968 = vunpack.c.l.b16 %v929
    %v969 = vunpack.c.l.b16 %v930
    %v970 = vunpack.c.l.b16 %v931
    %v971 = vpack.c.b16 %v956, %v955
    %v972 = vpack.c.b16 %v958, %v957
    %v973 = vpack.c.b16 %v960, %v959
    %v974 = vpack.c.b16 %v962, %v961
    %v975 = vpack.c.b16 %v964, %v963
    %v976 = vpack.c.b16 %v966, %v965
    %v977 = vpack.c.b16 %v968, %v967
    %v978 = vpack.c.b16 %v970, %v969
    %987 = vmatprep.subr.bf16.mxu0 0
    %988 = vmatpush1.bf16.msra.mxu0 %v971
    %989 = vmatprep.subr.bf16.mxu0 0
    %990 = vmatpush1.bf16.msra.mxu0 %v972
    %991 = vmatprep.subr.bf16.mxu0 0
    %992 = vmatpush1.bf16.msra.mxu0 %v973
    %993 = vmatprep.subr.bf16.mxu0 0
    %994 = vmatpush1.bf16.msra.mxu0 %v974
    %995 = vmatprep.subr.bf16.mxu0 0
    %996 = vmatpush1.bf16.msra.mxu0 %v975
    %997 = vmatprep.subr.bf16.mxu0 0
    %998 = vmatpush1.bf16.msra.mxu0 %v976
    %999 = vmatprep.subr.bf16.mxu0 0
    %1000 = vmatpush1.bf16.msra.mxu0 %v977
    %1001 = vmatprep.subr.bf16.mxu0 0
    %1002 = vmatpush1.bf16.msra.mxu0 %v978
    %1003 = vmatprep.subr.bf16.mxu0 0
    %1004 = vmatpush1.bf16.msra.mxu0 0
    %1005 = vmatprep.subr.bf16.mxu0 0
    %1006 = vmatpush1.bf16.msra.mxu0 0
    %1007 = vmatprep.subr.bf16.mxu0 0
    %1008 = vmatpush1.bf16.msra.mxu0 0
    %1009 = vmatprep.subr.bf16.mxu0 0
    %1010 = vmatpush1.bf16.msra.mxu0 0
    %1011 = vmatprep.subr.bf16.mxu0 0
    %1012 = vmatpush1.bf16.msra.mxu0 0
    %1013 = vmatprep.subr.bf16.mxu0 0
    %1014 = vmatpush1.bf16.msra.mxu0 0
    %1015 = vmatprep.subr.bf16.mxu0 0
    %1016 = vmatpush1.bf16.msra.mxu0 0
    %1017 = vmatprep.subr.bf16.mxu0 0
    %1018 = vmatpush1.bf16.msra.mxu0 0
    %1019 = vmatprep.mubr.bf16.mxu0 0
    %1020 = vmatmul.mubr.bf16.gmra.mrb[0].mxu0 %v913
    %v1021 = vpop.f32.mrb[0].mxu0
    %v1022 = vadd.f32 %v938, %v1021
    %v1023 = vpop.f32.mrb[0].mxu0
    %v1024 = vpop.f32.mrb[0].mxu0
    %v1025 = vadd.f32 %v938, %v1024
    %v1026 = vpop.f32.mrb[0].mxu0
    %1027 = vmatprep.mubr.bf16.mxu0 0
    %1028 = vmatmul.mubr.bf16.gmra.mrb[0].mxu0 %v914
    %v1029 = vpop.f32.mrb[0].mxu0
    %v1030 = vadd.f32 %v938, %v1029
    %v1031 = vpop.f32.mrb[0].mxu0
    %v1032 = vpop.f32.mrb[0].mxu0
    %v1033 = vadd.f32 %v938, %v1032
    %v1034 = vpop.f32.mrb[0].mxu0
    %1035 = vdwg.mxu0
    %v1036 = vmax.f32 %v1022, 0.0
    %v1037 = vmax.f32 %v1025, 0.0
    %v1038 = vmax.f32 %v1030, 0.0
    %v1039 = vmax.f32 %v1033, 0.0
    %v1040 = vpack.c.bf16 %v1037, %v1036
    %v1041 = vpack.c.bf16 %v1039, %v1038
    %1042 = vmatprep.subr.bf16.mxu0 0
    %1043 = vmatpush1.bf16.msra.mxu0 %v1040
    %1044 = vmatprep.subr.bf16.mxu0 0
    %1045 = vmatpush1.bf16.msra.mxu0 %v1041
    %1046 = vmatprep.subr.bf16.mxu0 0
    %1047 = vmatpush1.bf16.msra.mxu0 0
    %1048 = vmatprep.subr.bf16.mxu0 0
    %1049 = vmatpush1.bf16.msra.mxu0 0
    %1050 = vmatprep.subr.bf16.mxu0 0
    %1051 = vmatpush1.bf16.msra.mxu0 0
    %1052 = vmatprep.subr.bf16.mxu0 0
    %1053 = vmatpush1.bf16.msra.mxu0 0
    %1054 = vmatprep.subr.bf16.mxu0 0
    %1055 = vmatpush1.bf16.msra.mxu0 0
    %1056 = vmatprep.subr.bf16.mxu0 0
    %1057 = vmatpush1.bf16.msra.mxu0 0
    %1058 = vmatprep.subr.bf16.mxu0 0
    %1059 = vmatpush1.bf16.msra.mxu0 0
    %1060 = vmatprep.subr.bf16.mxu0 0
    %1061 = vmatpush1.bf16.msra.mxu0 0
    %1062 = vmatprep.subr.bf16.mxu0 0
    %1063 = vmatpush1.bf16.msra.mxu0 0
    %1064 = vmatprep.subr.bf16.mxu0 0
    %1065 = vmatpush1.bf16.msra.mxu0 0
    %1066 = vmatprep.subr.bf16.mxu0 0
    %1067 = vmatpush1.bf16.msra.mxu0 0
    %1068 = vmatprep.subr.bf16.mxu0 0
    %1069 = vmatpush1.bf16.msra.mxu0 0
    %1070 = vmatprep.subr.bf16.mxu0 0
    %1071 = vmatpush1.bf16.msra.mxu0 0
    %1072 = vmatprep.subr.bf16.mxu0 0
    %1073 = vmatpush1.bf16.msra.mxu0 0
    %1074 = vmatprep.mubr.bf16.mxu0 0
    %1075 = vmatmul.mubr.bf16.gmra.mrb[0].mxu0 %v799
    %v1076 = vpop.f32.mrb[0].mxu0
    %v1077 = vadd.f32 0.0, %v1076
    %v1078 = vpop.f32.mrb[0].mxu0
    %v1079 = vpop.f32.mrb[0].mxu0
    %v1080 = vpop.f32.mrb[0].mxu0
    %1081 = vdwg.mxu0
    %v1082 = vmul.bf16 %v1040, %v1040
    %v1083 = vmul.bf16 %v1041, %v1041
    %1084 = vmatprep.subr.bf16.mxu0 0
    %1085 = vmatpush1.bf16.msra.mxu0 %v1082
    %1086 = vmatprep.subr.bf16.mxu0 0
    %1087 = vmatpush1.bf16.msra.mxu0 %v1083
    %1088 = vmatprep.subr.bf16.mxu0 0
    %1089 = vmatpush1.bf16.msra.mxu0 0
    %1090 = vmatprep.subr.bf16.mxu0 0
    %1091 = vmatpush1.bf16.msra.mxu0 0
    %1092 = vmatprep.subr.bf16.mxu0 0
    %1093 = vmatpush1.bf16.msra.mxu0 0
    %1094 = vmatprep.subr.bf16.mxu0 0
    %1095 = vmatpush1.bf16.msra.mxu0 0
    %1096 = vmatprep.subr.bf16.mxu0 0
    %1097 = vmatpush1.bf16.msra.mxu0 0
    %1098 = vmatprep.subr.bf16.mxu0 0
    %1099 = vmatpush1.bf16.msra.mxu0 0
    %1100 = vmatprep.subr.bf16.mxu0 0
    %1101 = vmatpush1.bf16.msra.mxu0 0
    %1102 = vmatprep.subr.bf16.mxu0 0
    %1103 = vmatpush1.bf16.msra.mxu0 0
    %1104 = vmatprep.subr.bf16.mxu0 0
    %1105 = vmatpush1.bf16.msra.mxu0 0
    %1106 = vmatprep.subr.bf16.mxu0 0
    %1107 = vmatpush1.bf16.msra.mxu0 0
    %1108 = vmatprep.subr.bf16.mxu0 0
    %1109 = vmatpush1.bf16.msra.mxu0 0
    %1110 = vmatprep.subr.bf16.mxu0 0
    %1111 = vmatpush1.bf16.msra.mxu0 0
    %1112 = vmatprep.subr.bf16.mxu0 0
    %1113 = vmatpush1.bf16.msra.mxu0 0
    %1114 = vmatprep.subr.bf16.mxu0 0
    %1115 = vmatpush1.bf16.msra.mxu0 0
    %1116 = vmatprep.mubr.bf16.mxu0 0
    %1117 = vmatmul.mubr.bf16.gmra.mrb[0].mxu0 %v799
    %v1118 = vpop.f32.mrb[0].mxu0
    %v1119 = vadd.f32 0.0, %v1118
    %v1120 = vpop.f32.mrb[0].mxu0
    %v1121 = vpop.f32.mrb[0].mxu0
    %v1122 = vpop.f32.mrb[0].mxu0
    %1123 = vdwg.mxu0
    %v1124 = vmul.f32 %v1077, 0.041666668
    %v1125 = vmul.f32 %v1119, 0.041666668
    %v1126 = vmul.f32 %v1124, %v1124
    %v1127 = vsub.f32 %v1125, %v1126
    %v1128 = vmax.f32 %v1127, 0.0
    %v1129 = vadd.f32 %v1128, 1e-05
    %v1130 = vrsqrt.pop %v1129
    %v1131 = vmul.f32 %v1130, %v933
    %v1132 = vmul.f32 %v1124, %v1131
    %v1133 = vsub.f32 %v934, %v1132
    %v1134 = vunpack.c.l.bf16 %v1040
    %v1135 = vunpack.c.h.bf16 %v1040
    %v1136 = vunpack.c.l.bf16 %v1041
    %v1137 = vunpack.c.h.bf16 %v1041
    %v1138 = vlaneseq
    %v1139 = vshrl.u32 %v1138, 7
    %v1140 = vsub.s32 0, %v1139
    %v1141 = vrot.slane %v1131, %v1140
    %v1142 = vmul.f32 %v1134, %v1141
    %v1143 = vmul.f32 %v1135, %v1141
    %v1144 = vmul.f32 %v1136, %v1141
    %v1145 = vmul.f32 %v1137, %v1141
    %v1146 = vlaneseq
    %v1147 = vshrl.u32 %v1146, 7
    %v1148 = vsub.s32 0, %v1147
    %v1149 = vrot.slane %v1133, %v1148
    %v1150 = vadd.f32 %v1142, %v1149
    %v1151 = vadd.f32 %v1143, %v1149
    %v1152 = vadd.f32 %v1144, %v1149
    %v1153 = vadd.f32 %v1145, %v1149
    %v1154 = vpack.c.bf16 %v1151, %v1150
    %v1155 = vpack.c.bf16 %v1153, %v1152
    %s1156 = scalar_lea.vmem [#allocation5], 256
    %v1157 = vld [vmem:[%s1156] sm:$0xf]
    %v1158 = vld [vmem:[%s1156 + $0x4] sm:$0xf]
    %v1159 = vld [vmem:[%s1156 + $0x8] sm:$0xf]
    %v1160 = vld [vmem:[%s1156 + $0xc] sm:$0xf]
    %v1161 = vld [vmem:[%s1156 + $0x10] sm:$0xf]
    %v1162 = vld [vmem:[%s1156 + $0x14] sm:$0xf]
    %v1163 = vld [vmem:[%s1156 + $0x18] sm:$0xf]
    %v1164 = vld [vmem:[%s1156 + $0x1c] sm:$0xf]
    %v1165 = vld [vmem:[%s1156 + $0x20] sm:$0xf]
    %v1166 = vld [vmem:[%s1156 + $0x24] sm:$0xf]
    %v1167 = vld [vmem:[%s1156 + $0x28] sm:$0xf]
    %v1168 = vld [vmem:[%s1156 + $0x2c] sm:$0xf]
    %v1169 = vld [vmem:[%s1156 + $0x30] sm:$0xf]
    %v1170 = vld [vmem:[%s1156 + $0x34] sm:$0xf]
    %v1171 = vld [vmem:[%s1156 + $0x38] sm:$0xf]
    %v1172 = vld [vmem:[%s1156 + $0x3c] sm:$0xf]
    %v1173 = vld [vmem:[#allocation7 + $0xc] sm:$0x1]
    %v1174 = vld [vmem:[#allocation7 + $0xd] sm:$0x1]
    %v1175 = vld [vmem:[#allocation7 + $0xe] sm:$0x1]
    %v1176 = vlaneseq
    %v1177 = vshrl.u32 %v1176, 7
    %v1178 = vsub.s32 0, %v1177
    %v1179 = vrot.slane %v1173, %v1178
    %v1196 = vunpack.c.l.b16 %v1157
    %v1197 = vunpack.c.l.b16 %v1158
    %v1198 = vunpack.c.l.b16 %v1159
    %v1199 = vunpack.c.l.b16 %v1160
    %v1200 = vunpack.c.l.b16 %v1161
    %v1201 = vunpack.c.l.b16 %v1162
    %v1202 = vunpack.c.l.b16 %v1163
    %v1203 = vunpack.c.l.b16 %v1164
    %v1204 = vunpack.c.l.b16 %v1165
    %v1205 = vunpack.c.l.b16 %v1166
    %v1206 = vunpack.c.l.b16 %v1167
    %v1207 = vunpack.c.l.b16 %v1168
    %v1208 = vunpack.c.l.b16 %v1169
    %v1209 = vunpack.c.l.b16 %v1170
    %v1210 = vunpack.c.l.b16 %v1171
    %v1211 = vunpack.c.l.b16 %v1172
    %v1212 = vpack.c.b16 %v1197, %v1196
    %v1213 = vpack.c.b16 %v1199, %v1198
    %v1214 = vpack.c.b16 %v1201, %v1200
    %v1215 = vpack.c.b16 %v1203, %v1202
    %v1216 = vpack.c.b16 %v1205, %v1204
    %v1217 = vpack.c.b16 %v1207, %v1206
    %v1218 = vpack.c.b16 %v1209, %v1208
    %v1219 = vpack.c.b16 %v1211, %v1210
    %1228 = vmatprep.subr.bf16.mxu0 0
    %1229 = vmatpush1.bf16.msra.mxu0 %v1212
    %1230 = vmatprep.subr.bf16.mxu0 0
    %1231 = vmatpush1.bf16.msra.mxu0 %v1213
    %1232 = vmatprep.subr.bf16.mxu0 0
    %1233 = vmatpush1.bf16.msra.mxu0 %v1214
    %1234 = vmatprep.subr.bf16.mxu0 0
    %1235 = vmatpush1.bf16.msra.mxu0 %v1215
    %1236 = vmatprep.subr.bf16.mxu0 0
    %1237 = vmatpush1.bf16.msra.mxu0 %v1216
    %1238 = vmatprep.subr.bf16.mxu0 0
    %1239 = vmatpush1.bf16.msra.mxu0 %v1217
    %1240 = vmatprep.subr.bf16.mxu0 0
    %1241 = vmatpush1.bf16.msra.mxu0 %v1218
    %1242 = vmatprep.subr.bf16.mxu0 0
    %1243 = vmatpush1.bf16.msra.mxu0 %v1219
    %1244 = vmatprep.subr.bf16.mxu0 0
    %1245 = vmatpush1.bf16.msra.mxu0 0
    %1246 = vmatprep.subr.bf16.mxu0 0
    %1247 = vmatpush1.bf16.msra.mxu0 0
    %1248 = vmatprep.subr.bf16.mxu0 0
    %1249 = vmatpush1.bf16.msra.mxu0 0
    %1250 = vmatprep.subr.bf16.mxu0 0
    %1251 = vmatpush1.bf16.msra.mxu0 0
    %1252 = vmatprep.subr.bf16.mxu0 0
    %1253 = vmatpush1.bf16.msra.mxu0 0
    %1254 = vmatprep.subr.bf16.mxu0 0
    %1255 = vmatpush1.bf16.msra.mxu0 0
    %1256 = vmatprep.subr.bf16.mxu0 0
    %1257 = vmatpush1.bf16.msra.mxu0 0
    %1258 = vmatprep.subr.bf16.mxu0 0
    %1259 = vmatpush1.bf16.msra.mxu0 0
    %1260 = vmatprep.mubr.bf16.mxu0 0
    %1261 = vmatmul.mubr.bf16.gmra.mrb[0].mxu0 %v1154
    %v1262 = vpop.f32.mrb[0].mxu0
    %v1263 = vadd.f32 %v1179, %v1262
    %v1264 = vpop.f32.mrb[0].mxu0
    %v1265 = vpop.f32.mrb[0].mxu0
    %v1266 = vadd.f32 %v1179, %v1265
    %v1267 = vpop.f32.mrb[0].mxu0
    %1268 = vmatprep.mubr.bf16.mxu0 0
    %1269 = vmatmul.mubr.bf16.gmra.mrb[0].mxu0 %v1155
    %v1270 = vpop.f32.mrb[0].mxu0
    %v1271 = vadd.f32 %v1179, %v1270
    %v1272 = vpop.f32.mrb[0].mxu0
    %v1273 = vpop.f32.mrb[0].mxu0
    %v1274 = vadd.f32 %v1179, %v1273
    %v1275 = vpop.f32.mrb[0].mxu0
    %1276 = vdwg.mxu0
    %v1277 = vmax.f32 %v1263, 0.0
    %v1278 = vmax.f32 %v1266, 0.0
    %v1279 = vmax.f32 %v1271, 0.0
    %v1280 = vmax.f32 %v1274, 0.0
    %v1281 = vpack.c.bf16 %v1278, %v1277
    %v1282 = vpack.c.bf16 %v1280, %v1279
    %1283 = vmatprep.subr.bf16.mxu0 0
    %1284 = vmatpush1.bf16.msra.mxu0 %v1281
    %1285 = vmatprep.subr.bf16.mxu0 0
    %1286 = vmatpush1.bf16.msra.mxu0 %v1282
    %1287 = vmatprep.subr.bf16.mxu0 0
    %1288 = vmatpush1.bf16.msra.mxu0 0
    %1289 = vmatprep.subr.bf16.mxu0 0
    %1290 = vmatpush1.bf16.msra.mxu0 0
    %1291 = vmatprep.subr.bf16.mxu0 0
    %1292 = vmatpush1.bf16.msra.mxu0 0
    %1293 = vmatprep.subr.bf16.mxu0 0
    %1294 = vmatpush1.bf16.msra.mxu0 0
    %1295 = vmatprep.subr.bf16.mxu0 0
    %1296 = vmatpush1.bf16.msra.mxu0 0
    %1297 = vmatprep.subr.bf16.mxu0 0
    %1298 = vmatpush1.bf16.msra.mxu0 0
    %1299 = vmatprep.subr.bf16.mxu0 0
    %1300 = vmatpush1.bf16.msra.mxu0 0
    %1301 = vmatprep.subr.bf16.mxu0 0
    %1302 = vmatpush1.bf16.msra.mxu0 0
    %1303 = vmatprep.subr.bf16.mxu0 0
    %1304 = vmatpush1.bf16.msra.mxu0 0
    %1305 = vmatprep.subr.bf16.mxu0 0
    %1306 = vmatpush1.bf16.msra.mxu0 0
    %1307 = vmatprep.subr.bf16.mxu0 0
    %1308 = vmatpush1.bf16.msra.mxu0 0
    %1309 = vmatprep.subr.bf16.mxu0 0
    %1310 = vmatpush1.bf16.msra.mxu0 0
    %1311 = vmatprep.subr.bf16.mxu0 0
    %1312 = vmatpush1.bf16.msra.mxu0 0
    %1313 = vmatprep.subr.bf16.mxu0 0
    %1314 = vmatpush1.bf16.msra.mxu0 0
    %1315 = vmatprep.mubr.bf16.mxu0 0
    %1316 = vmatmul.mubr.bf16.gmra.mrb[0].mxu0 %v799
    %v1317 = vpop.f32.mrb[0].mxu0
    %v1318 = vadd.f32 0.0, %v1317
    %v1319 = vpop.f32.mrb[0].mxu0
    %v1320 = vpop.f32.mrb[0].mxu0
    %v1321 = vpop.f32.mrb[0].mxu0
    %1322 = vdwg.mxu0
    %v1323 = vmul.bf16 %v1281, %v1281
    %v1324 = vmul.bf16 %v1282, %v1282
    %1325 = vmatprep.subr.bf16.mxu0 0
    %1326 = vmatpush1.bf16.msra.mxu0 %v1323
    %1327 = vmatprep.subr.bf16.mxu0 0
    %1328 = vmatpush1.bf16.msra.mxu0 %v1324
    %1329 = vmatprep.subr.bf16.mxu0 0
    %1330 = vmatpush1.bf16.msra.mxu0 0
    %1331 = vmatprep.subr.bf16.mxu0 0
    %1332 = vmatpush1.bf16.msra.mxu0 0
    %1333 = vmatprep.subr.bf16.mxu0 0
    %1334 = vmatpush1.bf16.msra.mxu0 0
    %1335 = vmatprep.subr.bf16.mxu0 0
    %1336 = vmatpush1.bf16.msra.mxu0 0
    %1337 = vmatprep.subr.bf16.mxu0 0
    %1338 = vmatpush1.bf16.msra.mxu0 0
    %1339 = vmatprep.subr.bf16.mxu0 0
    %1340 = vmatpush1.bf16.msra.mxu0 0
    %1341 = vmatprep.subr.bf16.mxu0 0
    %1342 = vmatpush1.bf16.msra.mxu0 0
    %1343 = vmatprep.subr.bf16.mxu0 0
    %1344 = vmatpush1.bf16.msra.mxu0 0
    %1345 = vmatprep.subr.bf16.mxu0 0
    %1346 = vmatpush1.bf16.msra.mxu0 0
    %1347 = vmatprep.subr.bf16.mxu0 0
    %1348 = vmatpush1.bf16.msra.mxu0 0
    %1349 = vmatprep.subr.bf16.mxu0 0
    %1350 = vmatpush1.bf16.msra.mxu0 0
    %1351 = vmatprep.subr.bf16.mxu0 0
    %1352 = vmatpush1.bf16.msra.mxu0 0
    %1353 = vmatprep.subr.bf16.mxu0 0
    %1354 = vmatpush1.bf16.msra.mxu0 0
    %1355 = vmatprep.subr.bf16.mxu0 0
    %1356 = vmatpush1.bf16.msra.mxu0 0
    %1357 = vmatprep.mubr.bf16.mxu0 0
    %1358 = vmatmul.mubr.bf16.gmra.mrb[0].mxu0 %v799
    %v1359 = vpop.f32.mrb[0].mxu0
    %v1360 = vadd.f32 0.0, %v1359
    %v1361 = vpop.f32.mrb[0].mxu0
    %v1362 = vpop.f32.mrb[0].mxu0
    %v1363 = vpop.f32.mrb[0].mxu0
    %1364 = vdwg.mxu0
    %v1365 = vmul.f32 %v1318, 0.041666668
    %v1366 = vmul.f32 %v1360, 0.041666668
    %v1367 = vmul.f32 %v1365, %v1365
    %v1368 = vsub.f32 %v1366, %v1367
    %v1369 = vmax.f32 %v1368, 0.0
    %v1370 = vadd.f32 %v1369, 1e-05
    %v1371 = vrsqrt.pop %v1370
    %v1372 = vmul.f32 %v1371, %v1174
    %v1373 = vmul.f32 %v1365, %v1372
    %v1374 = vsub.f32 %v1175, %v1373
    %v1375 = vunpack.c.l.bf16 %v1281
    %v1376 = vunpack.c.h.bf16 %v1281
    %v1377 = vunpack.c.l.bf16 %v1282
    %v1378 = vunpack.c.h.bf16 %v1282
    %v1379 = vlaneseq
    %v1380 = vshrl.u32 %v1379, 7
    %v1381 = vsub.s32 0, %v1380
    %v1382 = vrot.slane %v1372, %v1381
    %v1383 = vmul.f32 %v1375, %v1382
    %v1384 = vmul.f32 %v1376, %v1382
    %v1385 = vmul.f32 %v1377, %v1382
    %v1386 = vmul.f32 %v1378, %v1382
    %v1387 = vlaneseq
    %v1388 = vshrl.u32 %v1387, 7
    %v1389 = vsub.s32 0, %v1388
    %v1390 = vrot.slane %v1374, %v1389
    %v1391 = vadd.f32 %v1383, %v1390
    %v1392 = vadd.f32 %v1384, %v1390
    %v1393 = vadd.f32 %v1385, %v1390
    %v1394 = vadd.f32 %v1386, %v1390
    %v1395 = vpack.c.bf16 %v1392, %v1391
    %v1396 = vpack.c.bf16 %v1394, %v1393
    %v1397 = vld [vmem:[%s2] sm:$0x6]
    %v1399 = vunpack.c.l.b16 %v1397
    %v1400 = vpack.c.b16 %v1399, %v1399
    %v1402 = vshrl.u32 %v1400, 16
    %v1404 = vrot.slane %v1402, 1
    %v1405 = vshll.u32 %v1400, 16
    %v1407 = vrot.slane %v1405, 2
    %v1408 = vor.u32 %v1404, %v1407
    %v1410 = vsel %vm254, %v1408, 0
    %1412 = vmatprep.subr.bf16.mxu0 0
    %1413 = vmatpush1.bf16.msra.mxu0 %v1395
    %1414 = vmatprep.subr.bf16.mxu0 0
    %1415 = vmatpush1.bf16.msra.mxu0 %v1396
    %1416 = vmatprep.subr.bf16.mxu0 0
    %1417 = vmatpush1.bf16.msra.mxu0 0
    %1418 = vmatprep.subr.bf16.mxu0 0
    %1419 = vmatpush1.bf16.msra.mxu0 0
    %1420 = vmatprep.subr.bf16.mxu0 0
    %1421 = vmatpush1.bf16.msra.mxu0 0
    %1422 = vmatprep.subr.bf16.mxu0 0
    %1423 = vmatpush1.bf16.msra.mxu0 0
    %1424 = vmatprep.subr.bf16.mxu0 0
    %1425 = vmatpush1.bf16.msra.mxu0 0
    %1426 = vmatprep.subr.bf16.mxu0 0
    %1427 = vmatpush1.bf16.msra.mxu0 0
    %1428 = vmatprep.subr.bf16.mxu0 0
    %1429 = vmatpush1.bf16.msra.mxu0 0
    %1430 = vmatprep.subr.bf16.mxu0 0
    %1431 = vmatpush1.bf16.msra.mxu0 0
    %1432 = vmatprep.subr.bf16.mxu0 0
    %1433 = vmatpush1.bf16.msra.mxu0 0
    %1434 = vmatprep.subr.bf16.mxu0 0
    %1435 = vmatpush1.bf16.msra.mxu0 0
    %1436 = vmatprep.subr.bf16.mxu0 0
    %1437 = vmatpush1.bf16.msra.mxu0 0
    %1438 = vmatprep.subr.bf16.mxu0 0
    %1439 = vmatpush1.bf16.msra.mxu0 0
    %1440 = vmatprep.subr.bf16.mxu0 0
    %1441 = vmatpush1.bf16.msra.mxu0 0
    %1442 = vmatprep.subr.bf16.mxu0 0
    %1443 = vmatpush1.bf16.msra.mxu0 0
    %1444 = vmatprep.mubr.bf16.mxu0 0
    %1445 = vmatmul.mubr.bf16.gmra.mrb[0].mxu0 %v1410
    %v1446 = vpop.f32.mrb[0].mxu0
    %v1447 = vadd.f32 0.0, %v1446
    %v1448 = vpop.f32.mrb[0].mxu0
    %v1449 = vpop.f32.mrb[0].mxu0
    %v1450 = vpop.f32.mrb[0].mxu0
    %1451 = vdwg.mxu0
    %v1452 = vmul.bf16 %v1395, %v1395
    %v1453 = vmul.bf16 %v1396, %v1396
    %1454 = vmatprep.subr.bf16.mxu0 0
    %1455 = vmatpush1.bf16.msra.mxu0 %v1452
    %1456 = vmatprep.subr.bf16.mxu0 0
    %1457 = vmatpush1.bf16.msra.mxu0 %v1453
    %1458 = vmatprep.subr.bf16.mxu0 0
    %1459 = vmatpush1.bf16.msra.mxu0 0
    %1460 = vmatprep.subr.bf16.mxu0 0
    %1461 = vmatpush1.bf16.msra.mxu0 0
    %1462 = vmatprep.subr.bf16.mxu0 0
    %1463 = vmatpush1.bf16.msra.mxu0 0
    %1464 = vmatprep.subr.bf16.mxu0 0
    %1465 = vmatpush1.bf16.msra.mxu0 0
    %1466 = vmatprep.subr.bf16.mxu0 0
    %1467 = vmatpush1.bf16.msra.mxu0 0
    %1468 = vmatprep.subr.bf16.mxu0 0
    %1469 = vmatpush1.bf16.msra.mxu0 0
    %1470 = vmatprep.subr.bf16.mxu0 0
    %1471 = vmatpush1.bf16.msra.mxu0 0
    %1472 = vmatprep.subr.bf16.mxu0 0
    %1473 = vmatpush1.bf16.msra.mxu0 0
    %1474 = vmatprep.subr.bf16.mxu0 0
    %1475 = vmatpush1.bf16.msra.mxu0 0
    %1476 = vmatprep.subr.bf16.mxu0 0
    %1477 = vmatpush1.bf16.msra.mxu0 0
    %1478 = vmatprep.subr.bf16.mxu0 0
    %1479 = vmatpush1.bf16.msra.mxu0 0
    %1480 = vmatprep.subr.bf16.mxu0 0
    %1481 = vmatpush1.bf16.msra.mxu0 0
    %1482 = vmatprep.subr.bf16.mxu0 0
    %1483 = vmatpush1.bf16.msra.mxu0 0
    %1484 = vmatprep.subr.bf16.mxu0 0
    %1485 = vmatpush1.bf16.msra.mxu0 0
    %1486 = vmatprep.mubr.bf16.mxu0 0
    %1487 = vmatmul.mubr.bf16.gmra.mrb[0].mxu0 %v1410
    %v1488 = vpop.f32.mrb[0].mxu0
    %v1489 = vadd.f32 0.0, %v1488
    %v1490 = vpop.f32.mrb[0].mxu0
    %v1491 = vpop.f32.mrb[0].mxu0
    %v1492 = vpop.f32.mrb[0].mxu0
    %1493 = vdwg.mxu0
    %v1494 = vmul.f32 %v1447, 0.083333336
    %v1495 = vmul.f32 %v1489, 0.083333336
    %v1496 = vmul.f32 %v1494, %v1494
    %v1497 = vsub.f32 %v1495, %v1496
    %v1498 = vmax.f32 %v1497, 0.0
    %v1499 = vmul.f32 %v1498, 1.0909091
    %v1500 = vrsqrt.pop %v1499
    %v1501 = vmul.f32 %v1499, %v1500
    %vm1502 = vcmp.eq.f32.partialorder %v1499, inf
    %v1503 = vsel %vm1502, %v1499, %v1501
    %vm1504 = vcmp.eq.f32.partialorder %v1499, 0.0
    %v1505 = vand.u32 %v1499, 2147483648
    %v1506 = vsel %vm1504, %v1505, %v1503
    %v1507 = vpack.c.bf16 %v1494, %v1494
    %s1508 = scalar_lea.vmem [#allocation5], 320
    %v1509 = vld [vmem:[%s1508] sm:$0xf]
    %v1510 = vld [vmem:[%s1508 + $0x4] sm:$0xf]
    %v1511 = vld [vmem:[%s1508 + $0x8] sm:$0xf]
    %v1512 = vld [vmem:[%s1508 + $0xc] sm:$0xf]
    %v1513 = vld [vmem:[%s1508 + $0x10] sm:$0xf]
    %v1514 = vld [vmem:[%s1508 + $0x14] sm:$0xf]
    %v1515 = vld [vmem:[%s1508 + $0x18] sm:$0xf]
    %v1516 = vld [vmem:[%s1508 + $0x1c] sm:$0xf]
    %v1517 = vld [vmem:[%s1508 + $0x20] sm:$0xf]
    %v1518 = vld [vmem:[%s1508 + $0x24] sm:$0xf]
    %v1519 = vld [vmem:[%s1508 + $0x28] sm:$0xf]
    %v1520 = vld [vmem:[%s1508 + $0x2c] sm:$0xf]
    %v1521 = vld [vmem:[%s1508 + $0x30] sm:$0xf]
    %v1522 = vld [vmem:[%s1508 + $0x34] sm:$0xf]
    %v1523 = vld [vmem:[%s1508 + $0x38] sm:$0xf]
    %v1524 = vld [vmem:[%s1508 + $0x3c] sm:$0xf]
    %v1525 = vpack.c.bf16 %v1506, %v1506
    %s1526 = scalar_lea.vmem [#allocation5], 384
    %v1527 = vld [vmem:[%s1526] sm:$0xf]
    %v1528 = vld [vmem:[%s1526 + $0x4] sm:$0xf]
    %v1529 = vld [vmem:[%s1526 + $0x8] sm:$0xf]
    %v1530 = vld [vmem:[%s1526 + $0xc] sm:$0xf]
    %v1531 = vld [vmem:[%s1526 + $0x10] sm:$0xf]
    %v1532 = vld [vmem:[%s1526 + $0x14] sm:$0xf]
    %v1533 = vld [vmem:[%s1526 + $0x18] sm:$0xf]
    %v1534 = vld [vmem:[%s1526 + $0x1c] sm:$0xf]
    %v1535 = vld [vmem:[%s1526 + $0x20] sm:$0xf]
    %v1536 = vld [vmem:[%s1526 + $0x24] sm:$0xf]
    %v1537 = vld [vmem:[%s1526 + $0x28] sm:$0xf]
    %v1538 = vld [vmem:[%s1526 + $0x2c] sm:$0xf]
    %v1539 = vld [vmem:[%s1526 + $0x30] sm:$0xf]
    %v1540 = vld [vmem:[%s1526 + $0x34] sm:$0xf]
    %v1541 = vld [vmem:[%s1526 + $0x38] sm:$0xf]
    %v1542 = vld [vmem:[%s1526 + $0x3c] sm:$0xf]
    %v1559 = vunpack.c.l.b16 %v1527
    %v1560 = vunpack.c.l.b16 %v1528
    %v1561 = vunpack.c.l.b16 %v1529
    %v1562 = vunpack.c.l.b16 %v1530
    %v1563 = vunpack.c.l.b16 %v1531
    %v1564 = vunpack.c.l.b16 %v1532
    %v1565 = vunpack.c.l.b16 %v1533
    %v1566 = vunpack.c.l.b16 %v1534
    %v1567 = vunpack.c.l.b16 %v1535
    %v1568 = vunpack.c.l.b16 %v1536
    %v1569 = vunpack.c.l.b16 %v1537
    %v1570 = vunpack.c.l.b16 %v1538
    %v1571 = vunpack.c.l.b16 %v1539
    %v1572 = vunpack.c.l.b16 %v1540
    %v1573 = vunpack.c.l.b16 %v1541
    %v1574 = vunpack.c.l.b16 %v1542
    %v1575 = vpack.c.b16 %v1560, %v1559
    %v1576 = vpack.c.b16 %v1562, %v1561
    %v1577 = vpack.c.b16 %v1564, %v1563
    %v1578 = vpack.c.b16 %v1566, %v1565
    %v1579 = vpack.c.b16 %v1568, %v1567
    %v1580 = vpack.c.b16 %v1570, %v1569
    %v1581 = vpack.c.b16 %v1572, %v1571
    %v1582 = vpack.c.b16 %v1574, %v1573
    %1591 = vmatprep.subr.bf16.mxu0 0
    %1592 = vmatpush1.bf16.msra.mxu0 %v1575
    %1593 = vmatprep.subr.bf16.mxu0 0
    %1594 = vmatpush1.bf16.msra.mxu0 %v1576
    %1595 = vmatprep.subr.bf16.mxu0 0
    %1596 = vmatpush1.bf16.msra.mxu0 %v1577
    %1597 = vmatprep.subr.bf16.mxu0 0
    %1598 = vmatpush1.bf16.msra.mxu0 %v1578
    %1599 = vmatprep.subr.bf16.mxu0 0
    %1600 = vmatpush1.bf16.msra.mxu0 %v1579
    %1601 = vmatprep.subr.bf16.mxu0 0
    %1602 = vmatpush1.bf16.msra.mxu0 %v1580
    %1603 = vmatprep.subr.bf16.mxu0 0
    %1604 = vmatpush1.bf16.msra.mxu0 %v1581
    %1605 = vmatprep.subr.bf16.mxu0 0
    %1606 = vmatpush1.bf16.msra.mxu0 %v1582
    %1607 = vmatprep.subr.bf16.mxu0 0
    %1608 = vmatpush1.bf16.msra.mxu0 0
    %1609 = vmatprep.subr.bf16.mxu0 0
    %1610 = vmatpush1.bf16.msra.mxu0 0
    %1611 = vmatprep.subr.bf16.mxu0 0
    %1612 = vmatpush1.bf16.msra.mxu0 0
    %1613 = vmatprep.subr.bf16.mxu0 0
    %1614 = vmatpush1.bf16.msra.mxu0 0
    %1615 = vmatprep.subr.bf16.mxu0 0
    %1616 = vmatpush1.bf16.msra.mxu0 0
    %1617 = vmatprep.subr.bf16.mxu0 0
    %1618 = vmatpush1.bf16.msra.mxu0 0
    %1619 = vmatprep.subr.bf16.mxu0 0
    %1620 = vmatpush1.bf16.msra.mxu0 0
    %1621 = vmatprep.subr.bf16.mxu0 0
    %1622 = vmatpush1.bf16.msra.mxu0 0
    %1623 = vmatprep.mubr.bf16.mxu0 0
    %1624 = vmatmul.mubr.bf16.gmra.mrb[0].mxu0 %v1525
    %v1625 = vpop.f32.mrb[0].mxu0
    %v1626 = vadd.f32 0.0, %v1625
    %v1627 = vpop.f32.mrb[0].mxu0
    %v1628 = vpop.f32.mrb[0].mxu0
    %v1629 = vpop.f32.mrb[0].mxu0
    %1630 = vdwg.mxu0
    %v1647 = vunpack.c.l.b16 %v1509
    %v1648 = vunpack.c.l.b16 %v1510
    %v1649 = vunpack.c.l.b16 %v1511
    %v1650 = vunpack.c.l.b16 %v1512
    %v1651 = vunpack.c.l.b16 %v1513
    %v1652 = vunpack.c.l.b16 %v1514
    %v1653 = vunpack.c.l.b16 %v1515
    %v1654 = vunpack.c.l.b16 %v1516
    %v1655 = vunpack.c.l.b16 %v1517
    %v1656 = vunpack.c.l.b16 %v1518
    %v1657 = vunpack.c.l.b16 %v1519
    %v1658 = vunpack.c.l.b16 %v1520
    %v1659 = vunpack.c.l.b16 %v1521
    %v1660 = vunpack.c.l.b16 %v1522
    %v1661 = vunpack.c.l.b16 %v1523
    %v1662 = vunpack.c.l.b16 %v1524
    %v1663 = vpack.c.b16 %v1648, %v1647
    %v1664 = vpack.c.b16 %v1650, %v1649
    %v1665 = vpack.c.b16 %v1652, %v1651
    %v1666 = vpack.c.b16 %v1654, %v1653
    %v1667 = vpack.c.b16 %v1656, %v1655
    %v1668 = vpack.c.b16 %v1658, %v1657
    %v1669 = vpack.c.b16 %v1660, %v1659
    %v1670 = vpack.c.b16 %v1662, %v1661
    %1679 = vmatprep.subr.bf16.mxu0 0
    %1680 = vmatpush1.bf16.msra.mxu0 %v1663
    %1681 = vmatprep.subr.bf16.mxu0 0
    %1682 = vmatpush1.bf16.msra.mxu0 %v1664
    %1683 = vmatprep.subr.bf16.mxu0 0
    %1684 = vmatpush1.bf16.msra.mxu0 %v1665
    %1685 = vmatprep.subr.bf16.mxu0 0
    %1686 = vmatpush1.bf16.msra.mxu0 %v1666
    %1687 = vmatprep.subr.bf16.mxu0 0
    %1688 = vmatpush1.bf16.msra.mxu0 %v1667
    %1689 = vmatprep.subr.bf16.mxu0 0
    %1690 = vmatpush1.bf16.msra.mxu0 %v1668
    %1691 = vmatprep.subr.bf16.mxu0 0
    %1692 = vmatpush1.bf16.msra.mxu0 %v1669
    %1693 = vmatprep.subr.bf16.mxu0 0
    %1694 = vmatpush1.bf16.msra.mxu0 %v1670
    %1695 = vmatprep.subr.bf16.mxu0 0
    %1696 = vmatpush1.bf16.msra.mxu0 0
    %1697 = vmatprep.subr.bf16.mxu0 0
    %1698 = vmatpush1.bf16.msra.mxu0 0
    %1699 = vmatprep.subr.bf16.mxu0 0
    %1700 = vmatpush1.bf16.msra.mxu0 0
    %1701 = vmatprep.subr.bf16.mxu0 0
    %1702 = vmatpush1.bf16.msra.mxu0 0
    %1703 = vmatprep.subr.bf16.mxu0 0
    %1704 = vmatpush1.bf16.msra.mxu0 0
    %1705 = vmatprep.subr.bf16.mxu0 0
    %1706 = vmatpush1.bf16.msra.mxu0 0
    %1707 = vmatprep.subr.bf16.mxu0 0
    %1708 = vmatpush1.bf16.msra.mxu0 0
    %1709 = vmatprep.subr.bf16.mxu0 0
    %1710 = vmatpush1.bf16.msra.mxu0 0
    %1711 = vmatprep.mubr.bf16.mxu0 0
    %1712 = vmatmul.mubr.bf16.gmra.mrb[0].mxu0 %v1507
    %v1713 = vpop.f32.mrb[0].mxu0
    %v1714 = vadd.f32 %v1626, %v1713
    %v1715 = vpop.f32.mrb[0].mxu0
    %v1716 = vpop.f32.mrb[0].mxu0
    %v1717 = vpop.f32.mrb[0].mxu0
    %1718 = vdwg.mxu0
    %v1719 = vld [vmem:[#allocation7 + $0xf] sm:$0x1]
    %v1720 = vld [vmem:[#allocation7 + $0x10] sm:$0x1]
    %v1721 = vld [vmem:[#allocation7 + $0x11] sm:$0x1]
    %v1722 = vlaneseq
    %v1723 = vshrl.u32 %v1722, 7
    %v1724 = vsub.s32 0, %v1723
    %v1725 = vrot.slane %v1719, %v1724
    %v1726 = vadd.f32 %v1714, %v1725
    %v1727 = vmax.f32 %v1726, 0.0
    %vm1728 = vcmask 1041408
    %v1729 = vsel %vm1728, %v1727, 0.0
    %v1730 = vrot.slane %v1729, 4
    %v1731 = vadd.f32 %v1729, %v1730
    %v1732 = vrot.slane %v1731, 2
    %v1733 = vadd.f32 %v1731, %v1732
    %v1734 = vrot.slane %v1733, 1
    %v1735 = vadd.f32 %v1733, %v1734
    %v1736 = vmul.f32 %v1735, 0.5
    %v1737 = vsub.f32 %v1727, %v1736
    %v1738 = vmul.f32 %v1737, %v1737
    %v1739 = vsel %vm1728, %v1738, 0.0
    %v1740 = vrot.slane %v1739, 4
    %v1741 = vadd.f32 %v1739, %v1740
    %v1742 = vrot.slane %v1741, 2
    %v1743 = vadd.f32 %v1741, %v1742
    %v1744 = vrot.slane %v1743, 1
    %v1745 = vadd.f32 %v1743, %v1744
    %v1746 = vmul.f32 %v1745, 0.5
    %v1747 = vadd.f32 %v1746, 1e-05
    %v1748 = vrsqrt.pop %v1747
    %v1749 = vmul.f32 %v1737, %v1748
    %v1750 = vlaneseq
    %v1751 = vshrl.u32 %v1750, 7
    %v1752 = vsub.s32 0, %v1751
    %v1753 = vrot.slane %v1720, %v1752
    %v1754 = vmul.f32 %v1749, %v1753
    %v1755 = vlaneseq
    %v1756 = vshrl.u32 %v1755, 7
    %v1757 = vsub.s32 0, %v1756
    %v1758 = vrot.slane %v1721, %v1757
    %v1759 = vadd.f32 %v1754, %v1758
    %v1760 = vpack.c.bf16 %v1759, %v1759
    %s1761 = scalar_lea.vmem [#allocation5], 448
    %v1762 = vld [vmem:[%s1761] sm:$0xf]
    %v1763 = vld [vmem:[%s1761 + $0x4] sm:$0xf]
    %v1764 = vld [vmem:[%s1761 + $0x8] sm:$0xf]
    %v1765 = vld [vmem:[%s1761 + $0xc] sm:$0xf]
    %v1766 = vld [vmem:[%s1761 + $0x10] sm:$0xf]
    %v1767 = vld [vmem:[%s1761 + $0x14] sm:$0xf]
    %v1768 = vld [vmem:[%s1761 + $0x18] sm:$0xf]
    %v1769 = vld [vmem:[%s1761 + $0x1c] sm:$0xf]
    %v1770 = vld [vmem:[%s1761 + $0x20] sm:$0xf]
    %v1771 = vld [vmem:[%s1761 + $0x24] sm:$0xf]
    %v1772 = vld [vmem:[%s1761 + $0x28] sm:$0xf]
    %v1773 = vld [vmem:[%s1761 + $0x2c] sm:$0xf]
    %v1774 = vld [vmem:[%s1761 + $0x30] sm:$0xf]
    %v1775 = vld [vmem:[%s1761 + $0x34] sm:$0xf]
    %v1776 = vld [vmem:[%s1761 + $0x38] sm:$0xf]
    %v1777 = vld [vmem:[%s1761 + $0x3c] sm:$0xf]
    %v1778 = vld [vmem:[#allocation7 + $0x12] sm:$0x1]
    %v1779 = vld [vmem:[#allocation7 + $0x13] sm:$0x1]
    %v1780 = vld [vmem:[#allocation7 + $0x14] sm:$0x1]
    %v1781 = vlaneseq
    %v1782 = vshrl.u32 %v1781, 7
    %v1783 = vsub.s32 0, %v1782
    %v1784 = vrot.slane %v1778, %v1783
    %v1801 = vunpack.c.l.b16 %v1762
    %v1802 = vunpack.c.l.b16 %v1763
    %v1803 = vunpack.c.l.b16 %v1764
    %v1804 = vunpack.c.l.b16 %v1765
    %v1805 = vunpack.c.l.b16 %v1766
    %v1806 = vunpack.c.l.b16 %v1767
    %v1807 = vunpack.c.l.b16 %v1768
    %v1808 = vunpack.c.l.b16 %v1769
    %v1809 = vunpack.c.l.b16 %v1770
    %v1810 = vunpack.c.l.b16 %v1771
    %v1811 = vunpack.c.l.b16 %v1772
    %v1812 = vunpack.c.l.b16 %v1773
    %v1813 = vunpack.c.l.b16 %v1774
    %v1814 = vunpack.c.l.b16 %v1775
    %v1815 = vunpack.c.l.b16 %v1776
    %v1816 = vunpack.c.l.b16 %v1777
    %v1817 = vpack.c.b16 %v1802, %v1801
    %v1818 = vpack.c.b16 %v1804, %v1803
    %v1819 = vpack.c.b16 %v1806, %v1805
    %v1820 = vpack.c.b16 %v1808, %v1807
    %v1821 = vpack.c.b16 %v1810, %v1809
    %v1822 = vpack.c.b16 %v1812, %v1811
    %v1823 = vpack.c.b16 %v1814, %v1813
    %v1824 = vpack.c.b16 %v1816, %v1815
    %1833 = vmatprep.subr.bf16.mxu0 0
    %1834 = vmatpush1.bf16.msra.mxu0 %v1817
    %1835 = vmatprep.subr.bf16.mxu0 0
    %1836 = vmatpush1.bf16.msra.mxu0 %v1818
    %1837 = vmatprep.subr.bf16.mxu0 0
    %1838 = vmatpush1.bf16.msra.mxu0 %v1819
    %1839 = vmatprep.subr.bf16.mxu0 0
    %1840 = vmatpush1.bf16.msra.mxu0 %v1820
    %1841 = vmatprep.subr.bf16.mxu0 0
    %1842 = vmatpush1.bf16.msra.mxu0 %v1821
    %1843 = vmatprep.subr.bf16.mxu0 0
    %1844 = vmatpush1.bf16.msra.mxu0 %v1822
    %1845 = vmatprep.subr.bf16.mxu0 0
    %1846 = vmatpush1.bf16.msra.mxu0 %v1823
    %1847 = vmatprep.subr.bf16.mxu0 0
    %1848 = vmatpush1.bf16.msra.mxu0 %v1824
    %1849 = vmatprep.subr.bf16.mxu0 0
    %1850 = vmatpush1.bf16.msra.mxu0 0
    %1851 = vmatprep.subr.bf16.mxu0 0
    %1852 = vmatpush1.bf16.msra.mxu0 0
    %1853 = vmatprep.subr.bf16.mxu0 0
    %1854 = vmatpush1.bf16.msra.mxu0 0
    %1855 = vmatprep.subr.bf16.mxu0 0
    %1856 = vmatpush1.bf16.msra.mxu0 0
    %1857 = vmatprep.subr.bf16.mxu0 0
    %1858 = vmatpush1.bf16.msra.mxu0 0
    %1859 = vmatprep.subr.bf16.mxu0 0
    %1860 = vmatpush1.bf16.msra.mxu0 0
    %1861 = vmatprep.subr.bf16.mxu0 0
    %1862 = vmatpush1.bf16.msra.mxu0 0
    %1863 = vmatprep.subr.bf16.mxu0 0
    %1864 = vmatpush1.bf16.msra.mxu0 0
    %1865 = vmatprep.mubr.bf16.mxu0 0
    %1866 = vmatmul.mubr.bf16.gmra.mrb[0].mxu0 %v1760
    %v1867 = vpop.f32.mrb[0].mxu0
    %v1868 = vadd.f32 %v1784, %v1867
    %v1869 = vpop.f32.mrb[0].mxu0
    %v1870 = vpop.f32.mrb[0].mxu0
    %v1871 = vpop.f32.mrb[0].mxu0
    %1872 = vdwg.mxu0
    %v1873 = vmax.f32 %v1868, 0.0
    %v1874 = vsel %vm1728, %v1873, 0.0
    %v1875 = vrot.slane %v1874, 4
    %v1876 = vadd.f32 %v1874, %v1875
    %v1877 = vrot.slane %v1876, 2
    %v1878 = vadd.f32 %v1876, %v1877
    %v1879 = vrot.slane %v1878, 1
    %v1880 = vadd.f32 %v1878, %v1879
    %v1881 = vmul.f32 %v1880, 0.5
    %v1882 = vsub.f32 %v1873, %v1881
    %v1883 = vmul.f32 %v1882, %v1882
    %v1884 = vsel %vm1728, %v1883, 0.0
    %v1885 = vrot.slane %v1884, 4
    %v1886 = vadd.f32 %v1884, %v1885
    %v1887 = vrot.slane %v1886, 2
    %v1888 = vadd.f32 %v1886, %v1887
    %v1889 = vrot.slane %v1888, 1
    %v1890 = vadd.f32 %v1888, %v1889
    %v1891 = vmul.f32 %v1890, 0.5
    %v1892 = vadd.f32 %v1891, 1e-05
    %v1893 = vrsqrt.pop %v1892
    %v1894 = vmul.f32 %v1882, %v1893
    %v1895 = vlaneseq
    %v1896 = vshrl.u32 %v1895, 7
    %v1897 = vsub.s32 0, %v1896
    %v1898 = vrot.slane %v1779, %v1897
    %v1899 = vmul.f32 %v1894, %v1898
    %v1900 = vlaneseq
    %v1901 = vshrl.u32 %v1900, 7
    %v1902 = vsub.s32 0, %v1901
    %v1903 = vrot.slane %v1780, %v1902
    %v1904 = vadd.f32 %v1899, %v1903
    %v1905 = vpack.c.bf16 %v1904, %v1904
    %s1906 = scalar_lea.vmem [#allocation5], 512
    %v1907 = vld [vmem:[%s1906] sm:$0xf]
    %v1908 = vld [vmem:[%s1906 + $0x4] sm:$0xf]
    %v1909 = vld [vmem:[%s1906 + $0x8] sm:$0xf]
    %v1910 = vld [vmem:[%s1906 + $0xc] sm:$0xf]
    %v1911 = vld [vmem:[%s1906 + $0x10] sm:$0xf]
    %v1912 = vld [vmem:[%s1906 + $0x14] sm:$0xf]
    %v1913 = vld [vmem:[%s1906 + $0x18] sm:$0xf]
    %v1914 = vld [vmem:[%s1906 + $0x1c] sm:$0xf]
    %v1915 = vld [vmem:[%s1906 + $0x20] sm:$0xf]
    %v1916 = vld [vmem:[%s1906 + $0x24] sm:$0xf]
    %v1917 = vld [vmem:[%s1906 + $0x28] sm:$0xf]
    %v1918 = vld [vmem:[%s1906 + $0x2c] sm:$0xf]
    %v1919 = vld [vmem:[%s1906 + $0x30] sm:$0xf]
    %v1920 = vld [vmem:[%s1906 + $0x34] sm:$0xf]
    %v1921 = vld [vmem:[%s1906 + $0x38] sm:$0xf]
    %v1922 = vld [vmem:[%s1906 + $0x3c] sm:$0xf]
    %v1923 = vld [vmem:[#allocation7 + $0x15] sm:$0x1]
    %v1924 = vlaneseq
    %v1925 = vshrl.u32 %v1924, 7
    %v1926 = vsub.s32 0, %v1925
    %v1927 = vrot.slane %v1923, %v1926
    %v1944 = vunpack.c.l.b16 %v1907
    %v1945 = vunpack.c.l.b16 %v1908
    %v1946 = vunpack.c.l.b16 %v1909
    %v1947 = vunpack.c.l.b16 %v1910
    %v1948 = vunpack.c.l.b16 %v1911
    %v1949 = vunpack.c.l.b16 %v1912
    %v1950 = vunpack.c.l.b16 %v1913
    %v1951 = vunpack.c.l.b16 %v1914
    %v1952 = vunpack.c.l.b16 %v1915
    %v1953 = vunpack.c.l.b16 %v1916
    %v1954 = vunpack.c.l.b16 %v1917
    %v1955 = vunpack.c.l.b16 %v1918
    %v1956 = vunpack.c.l.b16 %v1919
    %v1957 = vunpack.c.l.b16 %v1920
    %v1958 = vunpack.c.l.b16 %v1921
    %v1959 = vunpack.c.l.b16 %v1922
    %v1960 = vpack.c.b16 %v1945, %v1944
    %v1961 = vpack.c.b16 %v1947, %v1946
    %v1962 = vpack.c.b16 %v1949, %v1948
    %v1963 = vpack.c.b16 %v1951, %v1950
    %v1964 = vpack.c.b16 %v1953, %v1952
    %v1965 = vpack.c.b16 %v1955, %v1954
    %v1966 = vpack.c.b16 %v1957, %v1956
    %v1967 = vpack.c.b16 %v1959, %v1958
    %1976 = vmatprep.subr.bf16.mxu0 0
    %1977 = vmatpush1.bf16.msra.mxu0 %v1960
    %1978 = vmatprep.subr.bf16.mxu0 0
    %1979 = vmatpush1.bf16.msra.mxu0 %v1961
    %1980 = vmatprep.subr.bf16.mxu0 0
    %1981 = vmatpush1.bf16.msra.mxu0 %v1962
    %1982 = vmatprep.subr.bf16.mxu0 0
    %1983 = vmatpush1.bf16.msra.mxu0 %v1963
    %1984 = vmatprep.subr.bf16.mxu0 0
    %1985 = vmatpush1.bf16.msra.mxu0 %v1964
    %1986 = vmatprep.subr.bf16.mxu0 0
    %1987 = vmatpush1.bf16.msra.mxu0 %v1965
    %1988 = vmatprep.subr.bf16.mxu0 0
    %1989 = vmatpush1.bf16.msra.mxu0 %v1966
    %1990 = vmatprep.subr.bf16.mxu0 0
    %1991 = vmatpush1.bf16.msra.mxu0 %v1967
    %1992 = vmatprep.subr.bf16.mxu0 0
    %1993 = vmatpush1.bf16.msra.mxu0 0
    %1994 = vmatprep.subr.bf16.mxu0 0
    %1995 = vmatpush1.bf16.msra.mxu0 0
    %1996 = vmatprep.subr.bf16.mxu0 0
    %1997 = vmatpush1.bf16.msra.mxu0 0
    %1998 = vmatprep.subr.bf16.mxu0 0
    %1999 = vmatpush1.bf16.msra.mxu0 0
    %2000 = vmatprep.subr.bf16.mxu0 0
    %2001 = vmatpush1.bf16.msra.mxu0 0
    %2002 = vmatprep.subr.bf16.mxu0 0
    %2003 = vmatpush1.bf16.msra.mxu0 0
    %2004 = vmatprep.subr.bf16.mxu0 0
    %2005 = vmatpush1.bf16.msra.mxu0 0
    %2006 = vmatprep.subr.bf16.mxu0 0
    %2007 = vmatpush1.bf16.msra.mxu0 0
    %2008 = vmatprep.mubr.bf16.mxu0 0
    %2009 = vmatmul.mubr.bf16.gmra.mrb[0].mxu0 %v1905
    %v2010 = vpop.f32.mrb[0].mxu0
    %v2011 = vadd.f32 %v1927, %v2010
    %v2012 = vpop.f32.mrb[0].mxu0
    %v2013 = vpop.f32.mrb[0].mxu0
    %v2014 = vpop.f32.mrb[0].mxu0
    %2015 = vdwg.mxu0
    %v2016 = vsel %vm1728, %v2011, -inf
    %2017 = vmax.xlane.f32.xlu0 %v2016
    %v2018 = vpop.xlane.xlu0 %2017
    %v2019 = vsub.f32 %v2011, %v2018
    %v2020 = vmul.f32 %v2019, 1.442695
    %v2021 = vpow.pop %v2020
    %v2022 = vsel %vm1728, %v2021, 0.0
    %2023 = vadd.xlane.f32.xlu0 %v2022
    %v2024 = vpop.xlane.xlu0 %2023
    %v2025 = vlog2.pop %v2024
    %v2026 = vmul.f32 %v2025, 0.6931472
    %v2027 = vadd.f32 %v2018, %v2026
    %v2028 = vld [vmem:[%s1] sm:$0x3]
    %v2029 = vmul.f32 %v2028, %v2011
    %v2030 = vsel %vm1728, %v2029, 0.0
    %2031 = vadd.xlane.f32.xlu0 %v2030
    %v2032 = vpop.xlane.xlu0 %2031
    %v2033 = vsub.f32 %v2027, %v2032
    %vm2034 = vcmask 1024
    %v2035 = vsel %vm2034, %v2033, 0.0
    %2036 = vadd.xlane.f32.xlu0 %v2035
    %v2037 = vpop.xlane.xlu0 %2036
    %v2038 = vrot.slane %v2037, 4
    %v2039 = vadd.f32 %v2037, %v2038
    %v2040 = vrot.slane %v2039, 2
    %v2041 = vadd.f32 %v2039, %v2040
    %v2042 = vrot.slane %v2041, 1
    %v2043 = vadd.f32 %v2041, %v2042
    %s2044 = vtos %v2043
    %s2045 = smul.f32 %s2044, 0.5
    %s2046 = scalar_lea.smem [#allocation8], 0
    %2047 = sst [smem:[%s2046]] %s2045
    // Predicated region
    $region34: #{tpu_custom_call.1} parent=1 // pred_check
      _
    $region35: #{tpu_custom_call.1} parent=1 // pred_check_branch
      %2049 = sbr.rel (0) target = $region37
    $region36: #{tpu_custom_call.1} parent=1 // pred_region
      %s2051 = ssub.s32 16, 16
      %2052 = vsyncadd [#allocation4], %s2051
      %2055 = dma.smem_to_hbm [#allocation8], 16, %s5, [#allocation4]
    $region37: #{tpu_custom_call.1} parent=1 // pred_fallthru
      _
    // Predicated region
    $region38: #{tpu_custom_call.1} parent=1 // pred_check
      _
    $region39: #{tpu_custom_call.1} parent=1 // pred_check_branch
      %2057 = sbr.rel (0) target = $region41
    $region40: #{tpu_custom_call.1} parent=1 // pred_region
      %2058 = dma.done [#allocation4], 16
    $region41: #{tpu_custom_call.1} parent=1 // pred_fallthru
      _
    %2059 = sfence
    %2060 = vsyncpa [#allocation3], 1
    %2061 = vsyncpa [#allocation6], 1
    %2062 = vsyncpa [#allocation4], 1

</llo_original>
